<compile_context>
chip_gen: v5e
topology: v5e:2x2
jax: 0.10.0
libtpu: 0.0.40
codegen_flags: <defaults>
</compile_context>

<pallas_src>
import jax
import jax.numpy as jnp
from jax.experimental import pallas as pl
from jax.experimental.pallas import tpu as pltpu


def value_net_kernel(x_ref, w1_ref, b1_ref, w2_ref, b2_ref, wv_ref, bv_ref, o_ref):
    # fc1 + ReLU  (MXU matmul, f32 accumulate)
    h1 = jnp.dot(x_ref[...], w1_ref[...], preferred_element_type=jnp.float32)
    h1 = jnp.maximum(h1 + b1_ref[...], 0.0)
    # fc2 + ReLU
    h2 = jnp.dot(h1, w2_ref[...], preferred_element_type=jnp.float32)
    h2 = jnp.maximum(h2 + b2_ref[...], 0.0)
    # value head (out_features = 1): VPU multiply + XLU lane reduction instead
    # of an N=1 MXU matmul.  wv_ref is the head weight as a (1, H2) row.
    v = jnp.sum(h2 * wv_ref[...], axis=-1)                # (TB,)
    # lane-dense store: batch sits on the lane axis of the (1, TB) output tile.
    o_ref[...] = (v[None, :] + bv_ref[...]).astype(o_ref.dtype)


def value_network_forward(state, params, *, tb=128):
    """state: [B, state_dims] float32 -> [B, 1] float32."""
    w1, b1, w2, b2, wv, bv = params
    B, S = state.shape
    H1 = w1.shape[1]
    H2 = w2.shape[1]

    # Head weight as a (1, H2) row so the kernel can do a VPU reduction.
    wv_row = wv.reshape(1, H2)

    # Pad batch to a multiple of the tile size (padded rows are discarded).
    nb = pl.cdiv(B, tb)
    b_pad = nb * tb
    if b_pad != B:
        state = jnp.pad(state, ((0, b_pad - B), (0, 0)))

    out = pl.pallas_call(
        value_net_kernel,
        out_shape=jax.ShapeDtypeStruct((1, b_pad), jnp.float32),
        grid_spec=pltpu.PrefetchScalarGridSpec(
            num_scalar_prefetch=0,
            grid=(nb,),
            in_specs=[
                pl.BlockSpec((tb, S), lambda i: (i, 0)),   # state tile
                pl.BlockSpec((S, H1), lambda i: (0, 0)),   # W1 (resident)
                pl.BlockSpec((1, H1), lambda i: (0, 0)),   # b1
                pl.BlockSpec((H1, H2), lambda i: (0, 0)),  # W2 (resident)
                pl.BlockSpec((1, H2), lambda i: (0, 0)),   # b2
                pl.BlockSpec((1, H2), lambda i: (0, 0)),   # Wv as a row
                pl.BlockSpec((1, 1), lambda i: (0, 0)),    # bv
            ],
            out_specs=pl.BlockSpec((1, tb), lambda i: (0, i)),
        ),
        compiler_params=pltpu.CompilerParams(
            dimension_semantics=("parallel",),
        ),
    )(state, w1, b1, w2, b2, wv_row, bv)

    # Wrapper-side layout plumbing: lane-dense (1, B_pad) -> (B, 1).
    return out[0, :B].reshape(B, 1)


def init_value_network_params(key, state_dims, fc1_dims=512, fc2_dims=512):
    """Deterministic init matching torch.nn.Linear default:
    U(-1/sqrt(fan_in), 1/sqrt(fan_in)) for both weight and bias.
    Weights are stored as [in_features, out_features] (transposed vs torch)."""
    ks = jax.random.split(key, 6)

    def linear(kw, kb, fan_in, fan_out):
        bound = 1.0 / jnp.sqrt(fan_in)
        w = jax.random.uniform(kw, (fan_in, fan_out), jnp.float32, -bound, bound)
        b = jax.random.uniform(kb, (1, fan_out), jnp.float32, -bound, bound)
        return w, b

    w1, b1 = linear(ks[0], ks[1], state_dims, fc1_dims)
    w2, b2 = linear(ks[2], ks[3], fc1_dims, fc2_dims)
    wv, bv = linear(ks[4], ks[5], fc2_dims, 1)
    return (w1, b1, w2, b2, wv, bv)


def reference_forward(state, params):
    w1, b1, w2, b2, wv, bv = params
    h1 = jnp.maximum(state @ w1 + b1, 0.0)
    h2 = jnp.maximum(h1 @ w2 + b2, 0.0)
    return h2 @ wv + bv


if __name__ == "__main__":
    key = jax.random.PRNGKey(0)
    k_param, k_state = jax.random.split(key)

    B = 8            # batch
    STATE_DIMS = 16  # state_dims[0]
    FC1 = 512
    FC2 = 512

    params = init_value_network_params(k_param, STATE_DIMS, FC1, FC2)
    state = jax.random.normal(k_state, (B, STATE_DIMS), dtype=jnp.float32)

    v = value_network_forward(state, params)
    v = jax.block_until_ready(v)

    v_ref = reference_forward(state, params)
    assert v.shape == (B, 1)
    assert jnp.allclose(v, v_ref, atol=2e-4, rtol=2e-4), (v, v_ref)

    print("KERNEL_OK")
</pallas_src>

<mosaic_0001>
module attributes {stable_mosaic.version = 11 : i64} {
  func.func @value_net_kernel(%arg0: i32, %arg1: memref<128x16xf32, #tpu.memory_space<vmem>>, %arg2: memref<16x512xf32, #tpu.memory_space<vmem>>, %arg3: memref<1x512xf32, #tpu.memory_space<vmem>>, %arg4: memref<512x512xf32, #tpu.memory_space<vmem>>, %arg5: memref<1x512xf32, #tpu.memory_space<vmem>>, %arg6: memref<1x512xf32, #tpu.memory_space<vmem>>, %arg7: memref<1x1xf32, #tpu.memory_space<vmem>>, %arg8: memref<1x128xf32, #tpu.memory_space<vmem>>) attributes {dimension_semantics = [#tpu.dimension_semantics<parallel>], iteration_bounds = array<i64: 1>, scalar_prefetch = 0 : i64, scratch_operands = 0 : i64, tpu.core_type = #tpu.core_type<tc>, window_params = [{transform_indices = @transform_0, window_bounds = array<i64: 128, 16>}, {pipeline_mode = #tpu.pipeline_mode<synchronous>, transform_indices = @transform_1, window_bounds = array<i64: 16, 512>}, {pipeline_mode = #tpu.pipeline_mode<synchronous>, transform_indices = @transform_2, window_bounds = array<i64: 1, 512>}, {pipeline_mode = #tpu.pipeline_mode<synchronous>, transform_indices = @transform_3, window_bounds = array<i64: 512, 512>}, {pipeline_mode = #tpu.pipeline_mode<synchronous>, transform_indices = @transform_4, window_bounds = array<i64: 1, 512>}, {pipeline_mode = #tpu.pipeline_mode<synchronous>, transform_indices = @transform_5, window_bounds = array<i64: 1, 512>}, {pipeline_mode = #tpu.pipeline_mode<synchronous>, transform_indices = @transform_6, window_bounds = array<i64: 1, 1>}, {transform_indices = @transform_7, window_bounds = array<i64: 1, 128>}]} {
    %c0 = arith.constant 0 : index
    %c0_0 = arith.constant 0 : index
    %0 = vector.load %arg1[%c0, %c0_0] : memref<128x16xf32, #tpu.memory_space<vmem>>, vector<128x16xf32>
    %c0_1 = arith.constant 0 : index
    %c0_2 = arith.constant 0 : index
    %1 = vector.load %arg2[%c0_1, %c0_2] : memref<16x512xf32, #tpu.memory_space<vmem>>, vector<16x512xf32>
    %cst = arith.constant dense<0.000000e+00> : vector<128x512xf32>
    %2 = tpu.matmul %0, %1, %cst {dimension_numbers = #tpu.dot_dimension_numbers<[1], [0], [0], [1], [0, 0, 1, 1], [], []>} : vector<128x16xf32>, vector<16x512xf32>, vector<128x512xf32> -> vector<128x512xf32>
    %c0_3 = arith.constant 0 : index
    %c0_4 = arith.constant 0 : index
    %3 = vector.load %arg3[%c0_3, %c0_4] : memref<1x512xf32, #tpu.memory_space<vmem>>, vector<1x512xf32>
    %4 = vector.broadcast %3 : vector<1x512xf32> to vector<128x512xf32>
    %5 = arith.addf %2, %4 : vector<128x512xf32>
    %cst_5 = arith.constant 0.000000e+00 : f32
    %6 = vector.broadcast %cst_5 : f32 to vector<128x512xf32>
    %7 = arith.maximumf %5, %6 : vector<128x512xf32>
    %c0_6 = arith.constant 0 : index
    %c0_7 = arith.constant 0 : index
    %8 = vector.load %arg4[%c0_6, %c0_7] : memref<512x512xf32, #tpu.memory_space<vmem>>, vector<512x512xf32>
    %cst_8 = arith.constant dense<0.000000e+00> : vector<128x512xf32>
    %9 = tpu.matmul %7, %8, %cst_8 {dimension_numbers = #tpu.dot_dimension_numbers<[1], [0], [0], [1], [0, 0, 1, 1], [], []>} : vector<128x512xf32>, vector<512x512xf32>, vector<128x512xf32> -> vector<128x512xf32>
    %c0_9 = arith.constant 0 : index
    %c0_10 = arith.constant 0 : index
    %10 = vector.load %arg5[%c0_9, %c0_10] : memref<1x512xf32, #tpu.memory_space<vmem>>, vector<1x512xf32>
    %11 = vector.broadcast %10 : vector<1x512xf32> to vector<128x512xf32>
    %12 = arith.addf %9, %11 : vector<128x512xf32>
    %cst_11 = arith.constant 0.000000e+00 : f32
    %13 = vector.broadcast %cst_11 : f32 to vector<128x512xf32>
    %14 = arith.maximumf %12, %13 : vector<128x512xf32>
    %c0_12 = arith.constant 0 : index
    %c0_13 = arith.constant 0 : index
    %15 = vector.load %arg6[%c0_12, %c0_13] : memref<1x512xf32, #tpu.memory_space<vmem>>, vector<1x512xf32>
    %16 = vector.broadcast %15 : vector<1x512xf32> to vector<128x512xf32>
    %17 = arith.mulf %14, %16 : vector<128x512xf32>
    %cst_14 = arith.constant dense<0.000000e+00> : vector<128xf32>
    %18 = vector.multi_reduction <add>, %17, %cst_14 [1] : vector<128x512xf32> to vector<128xf32>
    %19 = vector.shape_cast %18 : vector<128xf32> to vector<1x128xf32>
    %c0_15 = arith.constant 0 : index
    %c0_16 = arith.constant 0 : index
    %20 = vector.load %arg7[%c0_15, %c0_16] : memref<1x1xf32, #tpu.memory_space<vmem>>, vector<1x1xf32>
    %21 = vector.broadcast %20 : vector<1x1xf32> to vector<1x128xf32>
    %22 = arith.addf %19, %21 : vector<1x128xf32>
    %c0_17 = arith.constant 0 : index
    %c0_18 = arith.constant 0 : index
    %23 = vector.load %arg8[%c0_17, %c0_18] : memref<1x128xf32, #tpu.memory_space<vmem>>, vector<1x128xf32>
    tpu.vector_store %arg8[%c0_17, %c0_18], %22 {strides = array<i32>} : memref<1x128xf32, #tpu.memory_space<vmem>>, vector<1x128xf32>,
    return
  }
  func.func @transform_0(%arg0: i32) -> (i32, i32) {
    %c0_i32 = arith.constant 0 : i32
    %c0_i32_0 = arith.constant 0 : i32
    return %arg0, %c0_i32 : i32, i32
  }
  func.func @transform_1(%arg0: i32) -> (i32, i32) {
    %c0_i32 = arith.constant 0 : i32
    %c0_i32_0 = arith.constant 0 : i32
    %c0_i32_1 = arith.constant 0 : i32
    return %c0_i32, %c0_i32_0 : i32, i32
  }
  func.func @transform_2(%arg0: i32) -> (i32, i32) {
    %c0_i32 = arith.constant 0 : i32
    %c0_i32_0 = arith.constant 0 : i32
    %c0_i32_1 = arith.constant 0 : i32
    return %c0_i32, %c0_i32_0 : i32, i32
  }
  func.func @transform_3(%arg0: i32) -> (i32, i32) {
    %c0_i32 = arith.constant 0 : i32
    %c0_i32_0 = arith.constant 0 : i32
    %c0_i32_1 = arith.constant 0 : i32
    return %c0_i32, %c0_i32_0 : i32, i32
  }
  func.func @transform_4(%arg0: i32) -> (i32, i32) {
    %c0_i32 = arith.constant 0 : i32
    %c0_i32_0 = arith.constant 0 : i32
    %c0_i32_1 = arith.constant 0 : i32
    return %c0_i32, %c0_i32_0 : i32, i32
  }
  func.func @transform_5(%arg0: i32) -> (i32, i32) {
    %c0_i32 = arith.constant 0 : i32
    %c0_i32_0 = arith.constant 0 : i32
    %c0_i32_1 = arith.constant 0 : i32
    return %c0_i32, %c0_i32_0 : i32, i32
  }
  func.func @transform_6(%arg0: i32) -> (i32, i32) {
    %c0_i32 = arith.constant 0 : i32
    %c0_i32_0 = arith.constant 0 : i32
    %c0_i32_1 = arith.constant 0 : i32
    return %c0_i32, %c0_i32_0 : i32, i32
  }
  func.func @transform_7(%arg0: i32) -> (i32, i32) {
    %c0_i32 = arith.constant 0 : i32
    %c0_i32_0 = arith.constant 0 : i32
    return %c0_i32, %arg0 : i32, i32
  }
}

</mosaic_0001>

<llo_original>
// kernel: tpu_custom_call.1
$region0: #{tpu_custom_call.1}
  #allocation0 [shape = 'u32[]', space=smem, size = 0x4, offset = 0x4, fixed_abs, tag = 'smem constant byte address 0x4 - core index']
  #allocation1 [shape = 'u32[72,128]{1,0:T(1,128)}', space=vmem, size = 0x9000, scoped, tag = 'internal scratch']
  #allocation2 [shape = 'f32[1,1]{1,0:T(1,128)S(1)}', space=vmem, size = 0x200, scoped, tag = 'scoped memory for tpu_custom_call.1']
  %s0 = inlined_call_operand.vmem [shape: f32[128,16], index: 0, kind: input, shape index: {}]
  %s1 = inlined_call_operand.vmem [shape: f32[16,512], index: 1, kind: input, shape index: {}]
  %s2 = inlined_call_operand.vmem [shape: f32[1,512], index: 2, kind: input, shape index: {}]
  %s3 = inlined_call_operand.hbm [shape: f32[512,512], index: 3, kind: input, shape index: {}]
  %s4 = inlined_call_operand.vmem [shape: f32[1,512], index: 4, kind: input, shape index: {}]
  %s5 = inlined_call_operand.vmem [shape: f32[1,512], index: 5, kind: input, shape index: {}]
  %s6 = inlined_call_operand.<no memory space> [shape: f32[1,1], index: 6, kind: input, shape index: {}]
  %s7 = inlined_call_operand.hbm [shape: f32[1,128], index: 7, kind: output, shape index: {}]
  %s8 = sld [smem:[#allocation0]]
  $region42: #{tpu_custom_call.1} parent=0
    _
  %s10 = ssub.s32 1, %s8
  %s11 = scalar_select 0, %s10, %s8
  %v12 = vstv %s6
  %13 = vst [vmem:[#allocation2] sm:$0x1] %v12
  $region1: #{tpu_custom_call.1} parent=0
    #allocation3 [shape = 'u8[1048576]{0}', space=vmem, size = 0x100000, scoped, tag = 'input window, operand 3, single buffered']
    #allocation4 [shape = 's32[1]{0}', space=sflag, size = 0x4, scoped, tag = 'scoped memory for tpu_custom_call.1']
    #allocation5 [shape = 's32[1]{0}', space=sflag, size = 0x4, scoped, tag = 'scoped memory for tpu_custom_call.1']
    #allocation6 [shape = 'u8[512]{0}', space=vmem, size = 0x400, scoped, tag = 'output window, operand 0, single buffered']
    %14 = vsyncpa [#allocation4], 0
    %15 = vsyncpa [#allocation5], 0
    // Predicated region
    $region2: #{tpu_custom_call.1} parent=1 // pred_check
      _
    $region3: #{tpu_custom_call.1} parent=1 // pred_check_branch
      %17 = sbr.rel (0) target = $region5
    $region4: #{tpu_custom_call.1} parent=1 // pred_region
      _
    $region5: #{tpu_custom_call.1} parent=1 // pred_fallthru
      _
    // Predicated region
    $region6: #{tpu_custom_call.1} parent=1 // pred_check
      _
    $region7: #{tpu_custom_call.1} parent=1 // pred_check_branch
      %19 = sbr.rel (0) target = $region9
    $region8: #{tpu_custom_call.1} parent=1 // pred_region
      _
    $region9: #{tpu_custom_call.1} parent=1 // pred_fallthru
      _
    // Predicated region
    $region10: #{tpu_custom_call.1} parent=1 // pred_check
      _
    $region11: #{tpu_custom_call.1} parent=1 // pred_check_branch
      %21 = sbr.rel (0) target = $region13
    $region12: #{tpu_custom_call.1} parent=1 // pred_region
      _
    $region13: #{tpu_custom_call.1} parent=1 // pred_fallthru
      _
    // Predicated region
    $region14: #{tpu_custom_call.1} parent=1 // pred_check
      _
    $region15: #{tpu_custom_call.1} parent=1 // pred_check_branch
      %23 = sbr.rel (0) target = $region17
    $region16: #{tpu_custom_call.1} parent=1 // pred_region
      %25 = vsyncadd [#allocation4], 0
      %s26 = sshll.u32 %s3, 4
      %s27 = int_to_ptr.hbm [resolvable:$true] %s26
      %s28 = sshll.u32 [#allocation3], 4
      %s29 = int_to_ptr.vmem [resolvable:$true] %s28
      %34 = dma.hbm_to_vmem [thread:$0]  %s27, 32768, %s29, [#allocation4], 512, 512, 32
    $region17: #{tpu_custom_call.1} parent=1 // pred_fallthru
      _
    // Predicated region
    $region18: #{tpu_custom_call.1} parent=1 // pred_check
      _
    $region19: #{tpu_custom_call.1} parent=1 // pred_check_branch
      %36 = sbr.rel (0) target = $region21
    $region20: #{tpu_custom_call.1} parent=1 // pred_region
      _
    $region21: #{tpu_custom_call.1} parent=1 // pred_fallthru
      _
    // Predicated region
    $region22: #{tpu_custom_call.1} parent=1 // pred_check
      _
    $region23: #{tpu_custom_call.1} parent=1 // pred_check_branch
      %38 = sbr.rel (0) target = $region25
    $region24: #{tpu_custom_call.1} parent=1 // pred_region
      _
    $region25: #{tpu_custom_call.1} parent=1 // pred_fallthru
      _
    // Predicated region
    $region26: #{tpu_custom_call.1} parent=1 // pred_check
      _
    $region27: #{tpu_custom_call.1} parent=1 // pred_check_branch
      %40 = sbr.rel (0) target = $region29
    $region28: #{tpu_custom_call.1} parent=1 // pred_region
      _
    $region29: #{tpu_custom_call.1} parent=1 // pred_fallthru
      _
    // Predicated region
    $region30: #{tpu_custom_call.1} parent=1 // pred_check
      _
    $region31: #{tpu_custom_call.1} parent=1 // pred_check_branch
      %42 = sbr.rel (0) target = $region33
    $region32: #{tpu_custom_call.1} parent=1 // pred_region
      %44 = dma.done [#allocation4], 32768
    $region33: #{tpu_custom_call.1} parent=1 // pred_fallthru
      _
    %v45 = vld [vmem:[%s0] sm:$0xff]
    %v46 = vld [vmem:[%s0 + $0x8] sm:$0xff]
    %v47 = vld [vmem:[%s0 + $0x10] sm:$0xff]
    %v48 = vld [vmem:[%s0 + $0x18] sm:$0xff]
    %v49 = vld [vmem:[%s0 + $0x20] sm:$0xff]
    %v50 = vld [vmem:[%s0 + $0x28] sm:$0xff]
    %v51 = vld [vmem:[%s0 + $0x30] sm:$0xff]
    %v52 = vld [vmem:[%s0 + $0x38] sm:$0xff]
    %v53 = vld [vmem:[%s0 + $0x40] sm:$0xff]
    %v54 = vld [vmem:[%s0 + $0x48] sm:$0xff]
    %v55 = vld [vmem:[%s0 + $0x50] sm:$0xff]
    %v56 = vld [vmem:[%s0 + $0x58] sm:$0xff]
    %v57 = vld [vmem:[%s0 + $0x60] sm:$0xff]
    %v58 = vld [vmem:[%s0 + $0x68] sm:$0xff]
    %v59 = vld [vmem:[%s0 + $0x70] sm:$0xff]
    %v60 = vld [vmem:[%s0 + $0x78] sm:$0xff]
    %v61 = vld [vmem:[%s1] sm:$0xff]
    %v62 = vld [vmem:[%s1 + $0x8] sm:$0xff]
    %v63 = vld [vmem:[%s1 + $0x10] sm:$0xff]
    %v64 = vld [vmem:[%s1 + $0x18] sm:$0xff]
    %v65 = vld [vmem:[%s1 + $0x20] sm:$0xff]
    %v66 = vld [vmem:[%s1 + $0x28] sm:$0xff]
    %v67 = vld [vmem:[%s1 + $0x30] sm:$0xff]
    %v68 = vld [vmem:[%s1 + $0x38] sm:$0xff]
    %v69 = vld [vmem:[%s2] sm:$0xf]
    %v71 = vperm.slane %v69, 0
    %v72 = vperm.slane %v69, 1
    %v73 = vperm.slane %v69, 2
    %v74 = vperm.slane %v69, 3
    %vm79 = vcmask 130048
    %v81 = vsel %vm79, %v45, 0
    %v84 = vsel %vm79, %v46, 0
    %v87 = vsel %vm79, %v47, 0
    %v90 = vsel %vm79, %v48, 0
    %v93 = vsel %vm79, %v49, 0
    %v96 = vsel %vm79, %v50, 0
    %v99 = vsel %vm79, %v51, 0
    %v102 = vsel %vm79, %v52, 0
    %v105 = vsel %vm79, %v53, 0
    %v108 = vsel %vm79, %v54, 0
    %v111 = vsel %vm79, %v55, 0
    %v114 = vsel %vm79, %v56, 0
    %v117 = vsel %vm79, %v57, 0
    %v120 = vsel %vm79, %v58, 0
    %v123 = vsel %vm79, %v59, 0
    %v126 = vsel %vm79, %v60, 0
    %128 = vmatpush.msra.mxu0 0.0
    %129 = vmatpush.msra.mxu0 0.0
    %130 = vmatpush.msra.mxu0 0.0
    %131 = vmatpush.msra.mxu0 0.0
    %132 = vmatpush.msra.mxu0 0.0
    %133 = vmatpush.msra.mxu0 0.0
    %134 = vmatpush.msra.mxu0 0.0
    %135 = vmatpush.msra.mxu0 0.0
    %136 = vmatpush.msra.mxu0 0.0
    %137 = vmatpush.msra.mxu0 0.0
    %138 = vmatpush.msra.mxu0 0.0
    %139 = vmatpush.msra.mxu0 0.0
    %140 = vmatpush.msra.mxu0 0.0
    %141 = vmatpush.msra.mxu0 0.0
    %142 = vmatpush.msra.mxu0 %v65
    %143 = vmatpush.msra.mxu0 %v61
    %144 = vmatmul.f32.gmra.mxu0 %v81
    %v145 = vpop.f32.mrf.mxu0
    %v146 = vadd.f32 %v71, %v145
    %147 = vmatmul.f32.gmra.mxu0 %v84
    %v148 = vpop.f32.mrf.mxu0
    %v149 = vadd.f32 %v71, %v148
    %150 = vmatmul.f32.gmra.mxu0 %v87
    %v151 = vpop.f32.mrf.mxu0
    %v152 = vadd.f32 %v71, %v151
    %153 = vmatmul.f32.gmra.mxu0 %v90
    %v154 = vpop.f32.mrf.mxu0
    %v155 = vadd.f32 %v71, %v154
    %156 = vmatmul.f32.gmra.mxu0 %v93
    %v157 = vpop.f32.mrf.mxu0
    %v158 = vadd.f32 %v71, %v157
    %159 = vmatmul.f32.gmra.mxu0 %v96
    %v160 = vpop.f32.mrf.mxu0
    %v161 = vadd.f32 %v71, %v160
    %162 = vmatmul.f32.gmra.mxu0 %v99
    %v163 = vpop.f32.mrf.mxu0
    %v164 = vadd.f32 %v71, %v163
    %165 = vmatmul.f32.gmra.mxu0 %v102
    %v166 = vpop.f32.mrf.mxu0
    %v167 = vadd.f32 %v71, %v166
    %168 = vmatmul.f32.gmra.mxu0 %v105
    %v169 = vpop.f32.mrf.mxu0
    %v170 = vadd.f32 %v71, %v169
    %171 = vmatmul.f32.gmra.mxu0 %v108
    %v172 = vpop.f32.mrf.mxu0
    %v173 = vadd.f32 %v71, %v172
    %174 = vmatmul.f32.gmra.mxu0 %v111
    %v175 = vpop.f32.mrf.mxu0
    %v176 = vadd.f32 %v71, %v175
    %177 = vmatmul.f32.gmra.mxu0 %v114
    %v178 = vpop.f32.mrf.mxu0
    %v179 = vadd.f32 %v71, %v178
    %180 = vmatmul.f32.gmra.mxu0 %v117
    %v181 = vpop.f32.mrf.mxu0
    %v182 = vadd.f32 %v71, %v181
    %183 = vmatmul.f32.gmra.mxu0 %v120
    %v184 = vpop.f32.mrf.mxu0
    %v185 = vadd.f32 %v71, %v184
    %186 = vmatmul.f32.gmra.mxu0 %v123
    %v187 = vpop.f32.mrf.mxu0
    %v188 = vadd.f32 %v71, %v187
    %189 = vmatmul.f32.gmra.mxu0 %v126
    %v190 = vpop.f32.mrf.mxu0
    %v191 = vadd.f32 %v71, %v190
    %192 = vdwg.mxu0
    %193 = vmatpush.msra.mxu0 0.0
    %194 = vmatpush.msra.mxu0 0.0
    %195 = vmatpush.msra.mxu0 0.0
    %196 = vmatpush.msra.mxu0 0.0
    %197 = vmatpush.msra.mxu0 0.0
    %198 = vmatpush.msra.mxu0 0.0
    %199 = vmatpush.msra.mxu0 0.0
    %200 = vmatpush.msra.mxu0 0.0
    %201 = vmatpush.msra.mxu0 0.0
    %202 = vmatpush.msra.mxu0 0.0
    %203 = vmatpush.msra.mxu0 0.0
    %204 = vmatpush.msra.mxu0 0.0
    %205 = vmatpush.msra.mxu0 0.0
    %206 = vmatpush.msra.mxu0 0.0
    %207 = vmatpush.msra.mxu0 %v66
    %208 = vmatpush.msra.mxu0 %v62
    %209 = vmatmul.f32.gmra.mxu0 %v81
    %v210 = vpop.f32.mrf.mxu0
    %v211 = vadd.f32 %v72, %v210
    %212 = vmatmul.f32.gmra.mxu0 %v84
    %v213 = vpop.f32.mrf.mxu0
    %v214 = vadd.f32 %v72, %v213
    %215 = vmatmul.f32.gmra.mxu0 %v87
    %v216 = vpop.f32.mrf.mxu0
    %v217 = vadd.f32 %v72, %v216
    %218 = vmatmul.f32.gmra.mxu0 %v90
    %v219 = vpop.f32.mrf.mxu0
    %v220 = vadd.f32 %v72, %v219
    %221 = vmatmul.f32.gmra.mxu0 %v93
    %v222 = vpop.f32.mrf.mxu0
    %v223 = vadd.f32 %v72, %v222
    %224 = vmatmul.f32.gmra.mxu0 %v96
    %v225 = vpop.f32.mrf.mxu0
    %v226 = vadd.f32 %v72, %v225
    %227 = vmatmul.f32.gmra.mxu0 %v99
    %v228 = vpop.f32.mrf.mxu0
    %v229 = vadd.f32 %v72, %v228
    %230 = vmatmul.f32.gmra.mxu0 %v102
    %v231 = vpop.f32.mrf.mxu0
    %v232 = vadd.f32 %v72, %v231
    %233 = vmatmul.f32.gmra.mxu0 %v105
    %v234 = vpop.f32.mrf.mxu0
    %v235 = vadd.f32 %v72, %v234
    %236 = vmatmul.f32.gmra.mxu0 %v108
    %v237 = vpop.f32.mrf.mxu0
    %v238 = vadd.f32 %v72, %v237
    %239 = vmatmul.f32.gmra.mxu0 %v111
    %v240 = vpop.f32.mrf.mxu0
    %v241 = vadd.f32 %v72, %v240
    %242 = vmatmul.f32.gmra.mxu0 %v114
    %v243 = vpop.f32.mrf.mxu0
    %v244 = vadd.f32 %v72, %v243
    %245 = vmatmul.f32.gmra.mxu0 %v117
    %v246 = vpop.f32.mrf.mxu0
    %v247 = vadd.f32 %v72, %v246
    %248 = vmatmul.f32.gmra.mxu0 %v120
    %v249 = vpop.f32.mrf.mxu0
    %v250 = vadd.f32 %v72, %v249
    %251 = vmatmul.f32.gmra.mxu0 %v123
    %v252 = vpop.f32.mrf.mxu0
    %v253 = vadd.f32 %v72, %v252
    %254 = vmatmul.f32.gmra.mxu0 %v126
    %v255 = vpop.f32.mrf.mxu0
    %v256 = vadd.f32 %v72, %v255
    %257 = vdwg.mxu0
    %258 = vmatpush.msra.mxu0 0.0
    %259 = vmatpush.msra.mxu0 0.0
    %260 = vmatpush.msra.mxu0 0.0
    %261 = vmatpush.msra.mxu0 0.0
    %262 = vmatpush.msra.mxu0 0.0
    %263 = vmatpush.msra.mxu0 0.0
    %264 = vmatpush.msra.mxu0 0.0
    %265 = vmatpush.msra.mxu0 0.0
    %266 = vmatpush.msra.mxu0 0.0
    %267 = vmatpush.msra.mxu0 0.0
    %268 = vmatpush.msra.mxu0 0.0
    %269 = vmatpush.msra.mxu0 0.0
    %270 = vmatpush.msra.mxu0 0.0
    %271 = vmatpush.msra.mxu0 0.0
    %272 = vmatpush.msra.mxu0 %v67
    %273 = vmatpush.msra.mxu0 %v63
    %274 = vmatmul.f32.gmra.mxu0 %v81
    %v275 = vpop.f32.mrf.mxu0
    %v276 = vadd.f32 %v73, %v275
    %277 = vmatmul.f32.gmra.mxu0 %v84
    %v278 = vpop.f32.mrf.mxu0
    %v279 = vadd.f32 %v73, %v278
    %280 = vmatmul.f32.gmra.mxu0 %v87
    %v281 = vpop.f32.mrf.mxu0
    %v282 = vadd.f32 %v73, %v281
    %283 = vmatmul.f32.gmra.mxu0 %v90
    %v284 = vpop.f32.mrf.mxu0
    %v285 = vadd.f32 %v73, %v284
    %286 = vmatmul.f32.gmra.mxu0 %v93
    %v287 = vpop.f32.mrf.mxu0
    %v288 = vadd.f32 %v73, %v287
    %289 = vmatmul.f32.gmra.mxu0 %v96
    %v290 = vpop.f32.mrf.mxu0
    %v291 = vadd.f32 %v73, %v290
    %292 = vmatmul.f32.gmra.mxu0 %v99
    %v293 = vpop.f32.mrf.mxu0
    %v294 = vadd.f32 %v73, %v293
    %295 = vmatmul.f32.gmra.mxu0 %v102
    %v296 = vpop.f32.mrf.mxu0
    %v297 = vadd.f32 %v73, %v296
    %298 = vmatmul.f32.gmra.mxu0 %v105
    %v299 = vpop.f32.mrf.mxu0
    %v300 = vadd.f32 %v73, %v299
    %301 = vmatmul.f32.gmra.mxu0 %v108
    %v302 = vpop.f32.mrf.mxu0
    %v303 = vadd.f32 %v73, %v302
    %304 = vmatmul.f32.gmra.mxu0 %v111
    %v305 = vpop.f32.mrf.mxu0
    %v306 = vadd.f32 %v73, %v305
    %307 = vmatmul.f32.gmra.mxu0 %v114
    %v308 = vpop.f32.mrf.mxu0
    %v309 = vadd.f32 %v73, %v308
    %310 = vmatmul.f32.gmra.mxu0 %v117
    %v311 = vpop.f32.mrf.mxu0
    %v312 = vadd.f32 %v73, %v311
    %313 = vmatmul.f32.gmra.mxu0 %v120
    %v314 = vpop.f32.mrf.mxu0
    %v315 = vadd.f32 %v73, %v314
    %316 = vmatmul.f32.gmra.mxu0 %v123
    %v317 = vpop.f32.mrf.mxu0
    %v318 = vadd.f32 %v73, %v317
    %319 = vmatmul.f32.gmra.mxu0 %v126
    %v320 = vpop.f32.mrf.mxu0
    %v321 = vadd.f32 %v73, %v320
    %322 = vdwg.mxu0
    %323 = vmatpush.msra.mxu0 0.0
    %324 = vmatpush.msra.mxu0 0.0
    %325 = vmatpush.msra.mxu0 0.0
    %326 = vmatpush.msra.mxu0 0.0
    %327 = vmatpush.msra.mxu0 0.0
    %328 = vmatpush.msra.mxu0 0.0
    %329 = vmatpush.msra.mxu0 0.0
    %330 = vmatpush.msra.mxu0 0.0
    %331 = vmatpush.msra.mxu0 0.0
    %332 = vmatpush.msra.mxu0 0.0
    %333 = vmatpush.msra.mxu0 0.0
    %334 = vmatpush.msra.mxu0 0.0
    %335 = vmatpush.msra.mxu0 0.0
    %336 = vmatpush.msra.mxu0 0.0
    %337 = vmatpush.msra.mxu0 %v68
    %338 = vmatpush.msra.mxu0 %v64
    %339 = vmatmul.f32.gmra.mxu0 %v81
    %v340 = vpop.f32.mrf.mxu0
    %v341 = vadd.f32 %v74, %v340
    %342 = vmatmul.f32.gmra.mxu0 %v84
    %v343 = vpop.f32.mrf.mxu0
    %v344 = vadd.f32 %v74, %v343
    %345 = vmatmul.f32.gmra.mxu0 %v87
    %v346 = vpop.f32.mrf.mxu0
    %v347 = vadd.f32 %v74, %v346
    %348 = vmatmul.f32.gmra.mxu0 %v90
    %v349 = vpop.f32.mrf.mxu0
    %v350 = vadd.f32 %v74, %v349
    %351 = vmatmul.f32.gmra.mxu0 %v93
    %v352 = vpop.f32.mrf.mxu0
    %v353 = vadd.f32 %v74, %v352
    %354 = vmatmul.f32.gmra.mxu0 %v96
    %v355 = vpop.f32.mrf.mxu0
    %v356 = vadd.f32 %v74, %v355
    %357 = vmatmul.f32.gmra.mxu0 %v99
    %v358 = vpop.f32.mrf.mxu0
    %v359 = vadd.f32 %v74, %v358
    %360 = vmatmul.f32.gmra.mxu0 %v102
    %v361 = vpop.f32.mrf.mxu0
    %v362 = vadd.f32 %v74, %v361
    %363 = vmatmul.f32.gmra.mxu0 %v105
    %v364 = vpop.f32.mrf.mxu0
    %v365 = vadd.f32 %v74, %v364
    %366 = vmatmul.f32.gmra.mxu0 %v108
    %v367 = vpop.f32.mrf.mxu0
    %v368 = vadd.f32 %v74, %v367
    %369 = vmatmul.f32.gmra.mxu0 %v111
    %v370 = vpop.f32.mrf.mxu0
    %v371 = vadd.f32 %v74, %v370
    %372 = vmatmul.f32.gmra.mxu0 %v114
    %v373 = vpop.f32.mrf.mxu0
    %v374 = vadd.f32 %v74, %v373
    %375 = vmatmul.f32.gmra.mxu0 %v117
    %v376 = vpop.f32.mrf.mxu0
    %v377 = vadd.f32 %v74, %v376
    %378 = vmatmul.f32.gmra.mxu0 %v120
    %v379 = vpop.f32.mrf.mxu0
    %v380 = vadd.f32 %v74, %v379
    %381 = vmatmul.f32.gmra.mxu0 %v123
    %v382 = vpop.f32.mrf.mxu0
    %v383 = vadd.f32 %v74, %v382
    %384 = vmatmul.f32.gmra.mxu0 %v126
    %v385 = vpop.f32.mrf.mxu0
    %v386 = vadd.f32 %v74, %v385
    %387 = vdwg.mxu0
    %v388 = vmax.f32 %v146, 0.0
    %v389 = vmax.f32 %v211, 0.0
    %v390 = vmax.f32 %v276, 0.0
    %v391 = vmax.f32 %v341, 0.0
    %v392 = vmax.f32 %v149, 0.0
    %v393 = vmax.f32 %v214, 0.0
    %v394 = vmax.f32 %v279, 0.0
    %v395 = vmax.f32 %v344, 0.0
    %v396 = vmax.f32 %v152, 0.0
    %v397 = vmax.f32 %v217, 0.0
    %v398 = vmax.f32 %v282, 0.0
    %v399 = vmax.f32 %v347, 0.0
    %v400 = vmax.f32 %v155, 0.0
    %v401 = vmax.f32 %v220, 0.0
    %v402 = vmax.f32 %v285, 0.0
    %v403 = vmax.f32 %v350, 0.0
    %v404 = vmax.f32 %v158, 0.0
    %v405 = vmax.f32 %v223, 0.0
    %v406 = vmax.f32 %v288, 0.0
    %v407 = vmax.f32 %v353, 0.0
    %v408 = vmax.f32 %v161, 0.0
    %v409 = vmax.f32 %v226, 0.0
    %v410 = vmax.f32 %v291, 0.0
    %v411 = vmax.f32 %v356, 0.0
    %v412 = vmax.f32 %v164, 0.0
    %v413 = vmax.f32 %v229, 0.0
    %v414 = vmax.f32 %v294, 0.0
    %v415 = vmax.f32 %v359, 0.0
    %v416 = vmax.f32 %v167, 0.0
    %v417 = vmax.f32 %v232, 0.0
    %v418 = vmax.f32 %v297, 0.0
    %v419 = vmax.f32 %v362, 0.0
    %v420 = vmax.f32 %v170, 0.0
    %v421 = vmax.f32 %v235, 0.0
    %v422 = vmax.f32 %v300, 0.0
    %v423 = vmax.f32 %v365, 0.0
    %v424 = vmax.f32 %v173, 0.0
    %v425 = vmax.f32 %v238, 0.0
    %v426 = vmax.f32 %v303, 0.0
    %v427 = vmax.f32 %v368, 0.0
    %v428 = vmax.f32 %v176, 0.0
    %v429 = vmax.f32 %v241, 0.0
    %v430 = vmax.f32 %v306, 0.0
    %v431 = vmax.f32 %v371, 0.0
    %v432 = vmax.f32 %v179, 0.0
    %v433 = vmax.f32 %v244, 0.0
    %v434 = vmax.f32 %v309, 0.0
    %v435 = vmax.f32 %v374, 0.0
    %v436 = vmax.f32 %v182, 0.0
    %v437 = vmax.f32 %v247, 0.0
    %v438 = vmax.f32 %v312, 0.0
    %v439 = vmax.f32 %v377, 0.0
    %v440 = vmax.f32 %v185, 0.0
    %v441 = vmax.f32 %v250, 0.0
    %v442 = vmax.f32 %v315, 0.0
    %v443 = vmax.f32 %v380, 0.0
    %v444 = vmax.f32 %v188, 0.0
    %v445 = vmax.f32 %v253, 0.0
    %v446 = vmax.f32 %v318, 0.0
    %v447 = vmax.f32 %v383, 0.0
    %v448 = vmax.f32 %v191, 0.0
    %v449 = vmax.f32 %v256, 0.0
    %v450 = vmax.f32 %v321, 0.0
    %v451 = vmax.f32 %v386, 0.0
    %v452 = vld [vmem:[#allocation3] sm:$0xff]
    %v453 = vld [vmem:[#allocation3 + $0x8] sm:$0xff]
    %v454 = vld [vmem:[#allocation3 + $0x10] sm:$0xff]
    %v455 = vld [vmem:[#allocation3 + $0x18] sm:$0xff]
    %v456 = vld [vmem:[#allocation3 + $0x20] sm:$0xff]
    %v457 = vld [vmem:[#allocation3 + $0x28] sm:$0xff]
    %v458 = vld [vmem:[#allocation3 + $0x30] sm:$0xff]
    %v459 = vld [vmem:[#allocation3 + $0x38] sm:$0xff]
    %v460 = vld [vmem:[#allocation3 + $0x40] sm:$0xff]
    %v461 = vld [vmem:[#allocation3 + $0x48] sm:$0xff]
    %v462 = vld [vmem:[#allocation3 + $0x50] sm:$0xff]
    %v463 = vld [vmem:[#allocation3 + $0x58] sm:$0xff]
    %v464 = vld [vmem:[#allocation3 + $0x60] sm:$0xff]
    %v465 = vld [vmem:[#allocation3 + $0x68] sm:$0xff]
    %v466 = vld [vmem:[#allocation3 + $0x70] sm:$0xff]
    %v467 = vld [vmem:[#allocation3 + $0x78] sm:$0xff]
    %v468 = vld [vmem:[#allocation3 + $0x80] sm:$0xff]
    %v469 = vld [vmem:[#allocation3 + $0x88] sm:$0xff]
    %v470 = vld [vmem:[#allocation3 + $0x90] sm:$0xff]
    %v471 = vld [vmem:[#allocation3 + $0x98] sm:$0xff]
    %v472 = vld [vmem:[#allocation3 + $0xa0] sm:$0xff]
    %v473 = vld [vmem:[#allocation3 + $0xa8] sm:$0xff]
    %v474 = vld [vmem:[#allocation3 + $0xb0] sm:$0xff]
    %v475 = vld [vmem:[#allocation3 + $0xb8] sm:$0xff]
    %v476 = vld [vmem:[#allocation3 + $0xc0] sm:$0xff]
    %v477 = vld [vmem:[#allocation3 + $0xc8] sm:$0xff]
    %v478 = vld [vmem:[#allocation3 + $0xd0] sm:$0xff]
    %v479 = vld [vmem:[#allocation3 + $0xd8] sm:$0xff]
    %v480 = vld [vmem:[#allocation3 + $0xe0] sm:$0xff]
    %v481 = vld [vmem:[#allocation3 + $0xe8] sm:$0xff]
    %v482 = vld [vmem:[#allocation3 + $0xf0] sm:$0xff]
    %v483 = vld [vmem:[#allocation3 + $0xf8] sm:$0xff]
    %v484 = vld [vmem:[#allocation3 + $0x100] sm:$0xff]
    %v485 = vld [vmem:[#allocation3 + $0x108] sm:$0xff]
    %v486 = vld [vmem:[#allocation3 + $0x110] sm:$0xff]
    %v487 = vld [vmem:[#allocation3 + $0x118] sm:$0xff]
    %v488 = vld [vmem:[#allocation3 + $0x120] sm:$0xff]
    %v489 = vld [vmem:[#allocation3 + $0x128] sm:$0xff]
    %v490 = vld [vmem:[#allocation3 + $0x130] sm:$0xff]
    %v491 = vld [vmem:[#allocation3 + $0x138] sm:$0xff]
    %v492 = vld [vmem:[#allocation3 + $0x140] sm:$0xff]
    %v493 = vld [vmem:[#allocation3 + $0x148] sm:$0xff]
    %v494 = vld [vmem:[#allocation3 + $0x150] sm:$0xff]
    %v495 = vld [vmem:[#allocation3 + $0x158] sm:$0xff]
    %v496 = vld [vmem:[#allocation3 + $0x160] sm:$0xff]
    %v497 = vld [vmem:[#allocation3 + $0x168] sm:$0xff]
    %v498 = vld [vmem:[#allocation3 + $0x170] sm:$0xff]
    %v499 = vld [vmem:[#allocation3 + $0x178] sm:$0xff]
    %v500 = vld [vmem:[#allocation3 + $0x180] sm:$0xff]
    %v501 = vld [vmem:[#allocation3 + $0x188] sm:$0xff]
    %v502 = vld [vmem:[#allocation3 + $0x190] sm:$0xff]
    %v503 = vld [vmem:[#allocation3 + $0x198] sm:$0xff]
    %v504 = vld [vmem:[#allocation3 + $0x1a0] sm:$0xff]
    %v505 = vld [vmem:[#allocation3 + $0x1a8] sm:$0xff]
    %v506 = vld [vmem:[#allocation3 + $0x1b0] sm:$0xff]
    %v507 = vld [vmem:[#allocation3 + $0x1b8] sm:$0xff]
    %v508 = vld [vmem:[#allocation3 + $0x1c0] sm:$0xff]
    %v509 = vld [vmem:[#allocation3 + $0x1c8] sm:$0xff]
    %v510 = vld [vmem:[#allocation3 + $0x1d0] sm:$0xff]
    %v511 = vld [vmem:[#allocation3 + $0x1d8] sm:$0xff]
    %v512 = vld [vmem:[#allocation3 + $0x1e0] sm:$0xff]
    %v513 = vld [vmem:[#allocation3 + $0x1e8] sm:$0xff]
    %v514 = vld [vmem:[#allocation3 + $0x1f0] sm:$0xff]
    %v515 = vld [vmem:[#allocation3 + $0x1f8] sm:$0xff]
    %v516 = vld [vmem:[#allocation3 + $0x200] sm:$0xff]
    %v517 = vld [vmem:[#allocation3 + $0x208] sm:$0xff]
    %v518 = vld [vmem:[#allocation3 + $0x210] sm:$0xff]
    %v519 = vld [vmem:[#allocation3 + $0x218] sm:$0xff]
    %v520 = vld [vmem:[#allocation3 + $0x220] sm:$0xff]
    %v521 = vld [vmem:[#allocation3 + $0x228] sm:$0xff]
    %v522 = vld [vmem:[#allocation3 + $0x230] sm:$0xff]
    %v523 = vld [vmem:[#allocation3 + $0x238] sm:$0xff]
    %v524 = vld [vmem:[#allocation3 + $0x240] sm:$0xff]
    %v525 = vld [vmem:[#allocation3 + $0x248] sm:$0xff]
    %v526 = vld [vmem:[#allocation3 + $0x250] sm:$0xff]
    %v527 = vld [vmem:[#allocation3 + $0x258] sm:$0xff]
    %v528 = vld [vmem:[#allocation3 + $0x260] sm:$0xff]
    %v529 = vld [vmem:[#allocation3 + $0x268] sm:$0xff]
    %v530 = vld [vmem:[#allocation3 + $0x270] sm:$0xff]
    %v531 = vld [vmem:[#allocation3 + $0x278] sm:$0xff]
    %v532 = vld [vmem:[#allocation3 + $0x280] sm:$0xff]
    %v533 = vld [vmem:[#allocation3 + $0x288] sm:$0xff]
    %v534 = vld [vmem:[#allocation3 + $0x290] sm:$0xff]
    %v535 = vld [vmem:[#allocation3 + $0x298] sm:$0xff]
    %v536 = vld [vmem:[#allocation3 + $0x2a0] sm:$0xff]
    %v537 = vld [vmem:[#allocation3 + $0x2a8] sm:$0xff]
    %v538 = vld [vmem:[#allocation3 + $0x2b0] sm:$0xff]
    %v539 = vld [vmem:[#allocation3 + $0x2b8] sm:$0xff]
    %v540 = vld [vmem:[#allocation3 + $0x2c0] sm:$0xff]
    %v541 = vld [vmem:[#allocation3 + $0x2c8] sm:$0xff]
    %v542 = vld [vmem:[#allocation3 + $0x2d0] sm:$0xff]
    %v543 = vld [vmem:[#allocation3 + $0x2d8] sm:$0xff]
    %v544 = vld [vmem:[#allocation3 + $0x2e0] sm:$0xff]
    %v545 = vld [vmem:[#allocation3 + $0x2e8] sm:$0xff]
    %v546 = vld [vmem:[#allocation3 + $0x2f0] sm:$0xff]
    %v547 = vld [vmem:[#allocation3 + $0x2f8] sm:$0xff]
    %v548 = vld [vmem:[#allocation3 + $0x300] sm:$0xff]
    %v549 = vld [vmem:[#allocation3 + $0x308] sm:$0xff]
    %v550 = vld [vmem:[#allocation3 + $0x310] sm:$0xff]
    %v551 = vld [vmem:[#allocation3 + $0x318] sm:$0xff]
    %v552 = vld [vmem:[#allocation3 + $0x320] sm:$0xff]
    %v553 = vld [vmem:[#allocation3 + $0x328] sm:$0xff]
    %v554 = vld [vmem:[#allocation3 + $0x330] sm:$0xff]
    %v555 = vld [vmem:[#allocation3 + $0x338] sm:$0xff]
    %v556 = vld [vmem:[#allocation3 + $0x340] sm:$0xff]
    %v557 = vld [vmem:[#allocation3 + $0x348] sm:$0xff]
    %v558 = vld [vmem:[#allocation3 + $0x350] sm:$0xff]
    %v559 = vld [vmem:[#allocation3 + $0x358] sm:$0xff]
    %v560 = vld [vmem:[#allocation3 + $0x360] sm:$0xff]
    %v561 = vld [vmem:[#allocation3 + $0x368] sm:$0xff]
    %v562 = vld [vmem:[#allocation3 + $0x370] sm:$0xff]
    %v563 = vld [vmem:[#allocation3 + $0x378] sm:$0xff]
    %v564 = vld [vmem:[#allocation3 + $0x380] sm:$0xff]
    %v565 = vld [vmem:[#allocation3 + $0x388] sm:$0xff]
    %v566 = vld [vmem:[#allocation3 + $0x390] sm:$0xff]
    %v567 = vld [vmem:[#allocation3 + $0x398] sm:$0xff]
    %v568 = vld [vmem:[#allocation3 + $0x3a0] sm:$0xff]
    %v569 = vld [vmem:[#allocation3 + $0x3a8] sm:$0xff]
    %v570 = vld [vmem:[#allocation3 + $0x3b0] sm:$0xff]
    %v571 = vld [vmem:[#allocation3 + $0x3b8] sm:$0xff]
    %v572 = vld [vmem:[#allocation3 + $0x3c0] sm:$0xff]
    %v573 = vld [vmem:[#allocation3 + $0x3c8] sm:$0xff]
    %v574 = vld [vmem:[#allocation3 + $0x3d0] sm:$0xff]
    %v575 = vld [vmem:[#allocation3 + $0x3d8] sm:$0xff]
    %v576 = vld [vmem:[#allocation3 + $0x3e0] sm:$0xff]
    %v577 = vld [vmem:[#allocation3 + $0x3e8] sm:$0xff]
    %v578 = vld [vmem:[#allocation3 + $0x3f0] sm:$0xff]
    %v579 = vld [vmem:[#allocation3 + $0x3f8] sm:$0xff]
    %v580 = vld [vmem:[#allocation3 + $0x400] sm:$0xff]
    %v581 = vld [vmem:[#allocation3 + $0x408] sm:$0xff]
    %v582 = vld [vmem:[#allocation3 + $0x410] sm:$0xff]
    %v583 = vld [vmem:[#allocation3 + $0x418] sm:$0xff]
    %v584 = vld [vmem:[#allocation3 + $0x420] sm:$0xff]
    %v585 = vld [vmem:[#allocation3 + $0x428] sm:$0xff]
    %v586 = vld [vmem:[#allocation3 + $0x430] sm:$0xff]
    %v587 = vld [vmem:[#allocation3 + $0x438] sm:$0xff]
    %v588 = vld [vmem:[#allocation3 + $0x440] sm:$0xff]
    %v589 = vld [vmem:[#allocation3 + $0x448] sm:$0xff]
    %v590 = vld [vmem:[#allocation3 + $0x450] sm:$0xff]
    %v591 = vld [vmem:[#allocation3 + $0x458] sm:$0xff]
    %v592 = vld [vmem:[#allocation3 + $0x460] sm:$0xff]
    %v593 = vld [vmem:[#allocation3 + $0x468] sm:$0xff]
    %v594 = vld [vmem:[#allocation3 + $0x470] sm:$0xff]
    %v595 = vld [vmem:[#allocation3 + $0x478] sm:$0xff]
    %v596 = vld [vmem:[#allocation3 + $0x480] sm:$0xff]
    %v597 = vld [vmem:[#allocation3 + $0x488] sm:$0xff]
    %v598 = vld [vmem:[#allocation3 + $0x490] sm:$0xff]
    %v599 = vld [vmem:[#allocation3 + $0x498] sm:$0xff]
    %v600 = vld [vmem:[#allocation3 + $0x4a0] sm:$0xff]
    %v601 = vld [vmem:[#allocation3 + $0x4a8] sm:$0xff]
    %v602 = vld [vmem:[#allocation3 + $0x4b0] sm:$0xff]
    %v603 = vld [vmem:[#allocation3 + $0x4b8] sm:$0xff]
    %v604 = vld [vmem:[#allocation3 + $0x4c0] sm:$0xff]
    %v605 = vld [vmem:[#allocation3 + $0x4c8] sm:$0xff]
    %v606 = vld [vmem:[#allocation3 + $0x4d0] sm:$0xff]
    %v607 = vld [vmem:[#allocation3 + $0x4d8] sm:$0xff]
    %v608 = vld [vmem:[#allocation3 + $0x4e0] sm:$0xff]
    %v609 = vld [vmem:[#allocation3 + $0x4e8] sm:$0xff]
    %v610 = vld [vmem:[#allocation3 + $0x4f0] sm:$0xff]
    %v611 = vld [vmem:[#allocation3 + $0x4f8] sm:$0xff]
    %v612 = vld [vmem:[#allocation3 + $0x500] sm:$0xff]
    %v613 = vld [vmem:[#allocation3 + $0x508] sm:$0xff]
    %v614 = vld [vmem:[#allocation3 + $0x510] sm:$0xff]
    %v615 = vld [vmem:[#allocation3 + $0x518] sm:$0xff]
    %v616 = vld [vmem:[#allocation3 + $0x520] sm:$0xff]
    %v617 = vld [vmem:[#allocation3 + $0x528] sm:$0xff]
    %v618 = vld [vmem:[#allocation3 + $0x530] sm:$0xff]
    %v619 = vld [vmem:[#allocation3 + $0x538] sm:$0xff]
    %v620 = vld [vmem:[#allocation3 + $0x540] sm:$0xff]
    %v621 = vld [vmem:[#allocation3 + $0x548] sm:$0xff]
    %v622 = vld [vmem:[#allocation3 + $0x550] sm:$0xff]
    %v623 = vld [vmem:[#allocation3 + $0x558] sm:$0xff]
    %v624 = vld [vmem:[#allocation3 + $0x560] sm:$0xff]
    %v625 = vld [vmem:[#allocation3 + $0x568] sm:$0xff]
    %v626 = vld [vmem:[#allocation3 + $0x570] sm:$0xff]
    %v627 = vld [vmem:[#allocation3 + $0x578] sm:$0xff]
    %v628 = vld [vmem:[#allocation3 + $0x580] sm:$0xff]
    %v629 = vld [vmem:[#allocation3 + $0x588] sm:$0xff]
    %v630 = vld [vmem:[#allocation3 + $0x590] sm:$0xff]
    %v631 = vld [vmem:[#allocation3 + $0x598] sm:$0xff]
    %v632 = vld [vmem:[#allocation3 + $0x5a0] sm:$0xff]
    %v633 = vld [vmem:[#allocation3 + $0x5a8] sm:$0xff]
    %v634 = vld [vmem:[#allocation3 + $0x5b0] sm:$0xff]
    %v635 = vld [vmem:[#allocation3 + $0x5b8] sm:$0xff]
    %v636 = vld [vmem:[#allocation3 + $0x5c0] sm:$0xff]
    %v637 = vld [vmem:[#allocation3 + $0x5c8] sm:$0xff]
    %v638 = vld [vmem:[#allocation3 + $0x5d0] sm:$0xff]
    %v639 = vld [vmem:[#allocation3 + $0x5d8] sm:$0xff]
    %v640 = vld [vmem:[#allocation3 + $0x5e0] sm:$0xff]
    %v641 = vld [vmem:[#allocation3 + $0x5e8] sm:$0xff]
    %v642 = vld [vmem:[#allocation3 + $0x5f0] sm:$0xff]
    %v643 = vld [vmem:[#allocation3 + $0x5f8] sm:$0xff]
    %v644 = vld [vmem:[#allocation3 + $0x600] sm:$0xff]
    %v645 = vld [vmem:[#allocation3 + $0x608] sm:$0xff]
    %v646 = vld [vmem:[#allocation3 + $0x610] sm:$0xff]
    %v647 = vld [vmem:[#allocation3 + $0x618] sm:$0xff]
    %v648 = vld [vmem:[#allocation3 + $0x620] sm:$0xff]
    %v649 = vld [vmem:[#allocation3 + $0x628] sm:$0xff]
    %v650 = vld [vmem:[#allocation3 + $0x630] sm:$0xff]
    %v651 = vld [vmem:[#allocation3 + $0x638] sm:$0xff]
    %v652 = vld [vmem:[#allocation3 + $0x640] sm:$0xff]
    %v653 = vld [vmem:[#allocation3 + $0x648] sm:$0xff]
    %v654 = vld [vmem:[#allocation3 + $0x650] sm:$0xff]
    %v655 = vld [vmem:[#allocation3 + $0x658] sm:$0xff]
    %v656 = vld [vmem:[#allocation3 + $0x660] sm:$0xff]
    %v657 = vld [vmem:[#allocation3 + $0x668] sm:$0xff]
    %v658 = vld [vmem:[#allocation3 + $0x670] sm:$0xff]
    %v659 = vld [vmem:[#allocation3 + $0x678] sm:$0xff]
    %v660 = vld [vmem:[#allocation3 + $0x680] sm:$0xff]
    %v661 = vld [vmem:[#allocation3 + $0x688] sm:$0xff]
    %v662 = vld [vmem:[#allocation3 + $0x690] sm:$0xff]
    %v663 = vld [vmem:[#allocation3 + $0x698] sm:$0xff]
    %v664 = vld [vmem:[#allocation3 + $0x6a0] sm:$0xff]
    %v665 = vld [vmem:[#allocation3 + $0x6a8] sm:$0xff]
    %v666 = vld [vmem:[#allocation3 + $0x6b0] sm:$0xff]
    %v667 = vld [vmem:[#allocation3 + $0x6b8] sm:$0xff]
    %v668 = vld [vmem:[#allocation3 + $0x6c0] sm:$0xff]
    %v669 = vld [vmem:[#allocation3 + $0x6c8] sm:$0xff]
    %v670 = vld [vmem:[#allocation3 + $0x6d0] sm:$0xff]
    %v671 = vld [vmem:[#allocation3 + $0x6d8] sm:$0xff]
    %v672 = vld [vmem:[#allocation3 + $0x6e0] sm:$0xff]
    %v673 = vld [vmem:[#allocation3 + $0x6e8] sm:$0xff]
    %v674 = vld [vmem:[#allocation3 + $0x6f0] sm:$0xff]
    %v675 = vld [vmem:[#allocation3 + $0x6f8] sm:$0xff]
    %v676 = vld [vmem:[#allocation3 + $0x700] sm:$0xff]
    %v677 = vld [vmem:[#allocation3 + $0x708] sm:$0xff]
    %v678 = vld [vmem:[#allocation3 + $0x710] sm:$0xff]
    %v679 = vld [vmem:[#allocation3 + $0x718] sm:$0xff]
    %v680 = vld [vmem:[#allocation3 + $0x720] sm:$0xff]
    %v681 = vld [vmem:[#allocation3 + $0x728] sm:$0xff]
    %v682 = vld [vmem:[#allocation3 + $0x730] sm:$0xff]
    %v683 = vld [vmem:[#allocation3 + $0x738] sm:$0xff]
    %v684 = vld [vmem:[#allocation3 + $0x740] sm:$0xff]
    %v685 = vld [vmem:[#allocation3 + $0x748] sm:$0xff]
    %v686 = vld [vmem:[#allocation3 + $0x750] sm:$0xff]
    %v687 = vld [vmem:[#allocation3 + $0x758] sm:$0xff]
    %v688 = vld [vmem:[#allocation3 + $0x760] sm:$0xff]
    %v689 = vld [vmem:[#allocation3 + $0x768] sm:$0xff]
    %v690 = vld [vmem:[#allocation3 + $0x770] sm:$0xff]
    %v691 = vld [vmem:[#allocation3 + $0x778] sm:$0xff]
    %v692 = vld [vmem:[#allocation3 + $0x780] sm:$0xff]
    %v693 = vld [vmem:[#allocation3 + $0x788] sm:$0xff]
    %v694 = vld [vmem:[#allocation3 + $0x790] sm:$0xff]
    %v695 = vld [vmem:[#allocation3 + $0x798] sm:$0xff]
    %v696 = vld [vmem:[#allocation3 + $0x7a0] sm:$0xff]
    %v697 = vld [vmem:[#allocation3 + $0x7a8] sm:$0xff]
    %v698 = vld [vmem:[#allocation3 + $0x7b0] sm:$0xff]
    %v699 = vld [vmem:[#allocation3 + $0x7b8] sm:$0xff]
    %v700 = vld [vmem:[#allocation3 + $0x7c0] sm:$0xff]
    %v701 = vld [vmem:[#allocation3 + $0x7c8] sm:$0xff]
    %v702 = vld [vmem:[#allocation3 + $0x7d0] sm:$0xff]
    %v703 = vld [vmem:[#allocation3 + $0x7d8] sm:$0xff]
    %v704 = vld [vmem:[#allocation3 + $0x7e0] sm:$0xff]
    %v705 = vld [vmem:[#allocation3 + $0x7e8] sm:$0xff]
    %v706 = vld [vmem:[#allocation3 + $0x7f0] sm:$0xff]
    %v707 = vld [vmem:[#allocation3 + $0x7f8] sm:$0xff]
    %v708 = vld [vmem:[%s4] sm:$0xf]
    %v710 = vperm.slane %v708, 0
    %v711 = vperm.slane %v708, 1
    %v712 = vperm.slane %v708, 2
    %v713 = vperm.slane %v708, 3
    %718 = vmatpush.msra.mxu0 %v512
    %719 = vmatpush.msra.mxu0 %v508
    %720 = vmatpush.msra.mxu0 %v504
    %721 = vmatpush.msra.mxu0 %v500
    %722 = vmatpush.msra.mxu0 %v496
    %723 = vmatpush.msra.mxu0 %v492
    %724 = vmatpush.msra.mxu0 %v488
    %725 = vmatpush.msra.mxu0 %v484
    %726 = vmatpush.msra.mxu0 %v480
    %727 = vmatpush.msra.mxu0 %v476
    %728 = vmatpush.msra.mxu0 %v472
    %729 = vmatpush.msra.mxu0 %v468
    %730 = vmatpush.msra.mxu0 %v464
    %731 = vmatpush.msra.mxu0 %v460
    %732 = vmatpush.msra.mxu0 %v456
    %733 = vmatpush.msra.mxu0 %v452
    %734 = vmatmul.f32.gmra.mxu0 %v388
    %v735 = vpop.f32.mrf.mxu0
    %v736 = vadd.f32 %v710, %v735
    %737 = vmatmul.f32.gmra.mxu0 %v392
    %v738 = vpop.f32.mrf.mxu0
    %v739 = vadd.f32 %v710, %v738
    %740 = vmatmul.f32.gmra.mxu0 %v396
    %v741 = vpop.f32.mrf.mxu0
    %v742 = vadd.f32 %v710, %v741
    %743 = vmatmul.f32.gmra.mxu0 %v400
    %v744 = vpop.f32.mrf.mxu0
    %v745 = vadd.f32 %v710, %v744
    %746 = vmatmul.f32.gmra.mxu0 %v404
    %v747 = vpop.f32.mrf.mxu0
    %v748 = vadd.f32 %v710, %v747
    %749 = vmatmul.f32.gmra.mxu0 %v408
    %v750 = vpop.f32.mrf.mxu0
    %v751 = vadd.f32 %v710, %v750
    %752 = vmatmul.f32.gmra.mxu0 %v412
    %v753 = vpop.f32.mrf.mxu0
    %v754 = vadd.f32 %v710, %v753
    %755 = vmatmul.f32.gmra.mxu0 %v416
    %v756 = vpop.f32.mrf.mxu0
    %v757 = vadd.f32 %v710, %v756
    %758 = vmatmul.f32.gmra.mxu0 %v420
    %v759 = vpop.f32.mrf.mxu0
    %v760 = vadd.f32 %v710, %v759
    %761 = vmatmul.f32.gmra.mxu0 %v424
    %v762 = vpop.f32.mrf.mxu0
    %v763 = vadd.f32 %v710, %v762
    %764 = vmatmul.f32.gmra.mxu0 %v428
    %v765 = vpop.f32.mrf.mxu0
    %v766 = vadd.f32 %v710, %v765
    %767 = vmatmul.f32.gmra.mxu0 %v432
    %v768 = vpop.f32.mrf.mxu0
    %v769 = vadd.f32 %v710, %v768
    %770 = vmatmul.f32.gmra.mxu0 %v436
    %v771 = vpop.f32.mrf.mxu0
    %v772 = vadd.f32 %v710, %v771
    %773 = vmatmul.f32.gmra.mxu0 %v440
    %v774 = vpop.f32.mrf.mxu0
    %v775 = vadd.f32 %v710, %v774
    %776 = vmatmul.f32.gmra.mxu0 %v444
    %v777 = vpop.f32.mrf.mxu0
    %v778 = vadd.f32 %v710, %v777
    %779 = vmatmul.f32.gmra.mxu0 %v448
    %v780 = vpop.f32.mrf.mxu0
    %v781 = vadd.f32 %v710, %v780
    %782 = vdwg.mxu0
    %783 = vmatpush.msra.mxu0 %v576
    %784 = vmatpush.msra.mxu0 %v572
    %785 = vmatpush.msra.mxu0 %v568
    %786 = vmatpush.msra.mxu0 %v564
    %787 = vmatpush.msra.mxu0 %v560
    %788 = vmatpush.msra.mxu0 %v556
    %789 = vmatpush.msra.mxu0 %v552
    %790 = vmatpush.msra.mxu0 %v548
    %791 = vmatpush.msra.mxu0 %v544
    %792 = vmatpush.msra.mxu0 %v540
    %793 = vmatpush.msra.mxu0 %v536
    %794 = vmatpush.msra.mxu0 %v532
    %795 = vmatpush.msra.mxu0 %v528
    %796 = vmatpush.msra.mxu0 %v524
    %797 = vmatpush.msra.mxu0 %v520
    %798 = vmatpush.msra.mxu0 %v516
    %799 = vmatmul.f32.gmra.mxu0 %v389
    %v800 = vpop.f32.mrf.mxu0
    %v801 = vadd.f32 %v736, %v800
    %802 = vmatmul.f32.gmra.mxu0 %v393
    %v803 = vpop.f32.mrf.mxu0
    %v804 = vadd.f32 %v739, %v803
    %805 = vmatmul.f32.gmra.mxu0 %v397
    %v806 = vpop.f32.mrf.mxu0
    %v807 = vadd.f32 %v742, %v806
    %808 = vmatmul.f32.gmra.mxu0 %v401
    %v809 = vpop.f32.mrf.mxu0
    %v810 = vadd.f32 %v745, %v809
    %811 = vmatmul.f32.gmra.mxu0 %v405
    %v812 = vpop.f32.mrf.mxu0
    %v813 = vadd.f32 %v748, %v812
    %814 = vmatmul.f32.gmra.mxu0 %v409
    %v815 = vpop.f32.mrf.mxu0
    %v816 = vadd.f32 %v751, %v815
    %817 = vmatmul.f32.gmra.mxu0 %v413
    %v818 = vpop.f32.mrf.mxu0
    %v819 = vadd.f32 %v754, %v818
    %820 = vmatmul.f32.gmra.mxu0 %v417
    %v821 = vpop.f32.mrf.mxu0
    %v822 = vadd.f32 %v757, %v821
    %823 = vmatmul.f32.gmra.mxu0 %v421
    %v824 = vpop.f32.mrf.mxu0
    %v825 = vadd.f32 %v760, %v824
    %826 = vmatmul.f32.gmra.mxu0 %v425
    %v827 = vpop.f32.mrf.mxu0
    %v828 = vadd.f32 %v763, %v827
    %829 = vmatmul.f32.gmra.mxu0 %v429
    %v830 = vpop.f32.mrf.mxu0
    %v831 = vadd.f32 %v766, %v830
    %832 = vmatmul.f32.gmra.mxu0 %v433
    %v833 = vpop.f32.mrf.mxu0
    %v834 = vadd.f32 %v769, %v833
    %835 = vmatmul.f32.gmra.mxu0 %v437
    %v836 = vpop.f32.mrf.mxu0
    %v837 = vadd.f32 %v772, %v836
    %838 = vmatmul.f32.gmra.mxu0 %v441
    %v839 = vpop.f32.mrf.mxu0
    %v840 = vadd.f32 %v775, %v839
    %841 = vmatmul.f32.gmra.mxu0 %v445
    %v842 = vpop.f32.mrf.mxu0
    %v843 = vadd.f32 %v778, %v842
    %844 = vmatmul.f32.gmra.mxu0 %v449
    %v845 = vpop.f32.mrf.mxu0
    %v846 = vadd.f32 %v781, %v845
    %847 = vdwg.mxu0
    %848 = vmatpush.msra.mxu0 %v640
    %849 = vmatpush.msra.mxu0 %v636
    %850 = vmatpush.msra.mxu0 %v632
    %851 = vmatpush.msra.mxu0 %v628
    %852 = vmatpush.msra.mxu0 %v624
    %853 = vmatpush.msra.mxu0 %v620
    %854 = vmatpush.msra.mxu0 %v616
    %855 = vmatpush.msra.mxu0 %v612
    %856 = vmatpush.msra.mxu0 %v608
    %857 = vmatpush.msra.mxu0 %v604
    %858 = vmatpush.msra.mxu0 %v600
    %859 = vmatpush.msra.mxu0 %v596
    %860 = vmatpush.msra.mxu0 %v592
    %861 = vmatpush.msra.mxu0 %v588
    %862 = vmatpush.msra.mxu0 %v584
    %863 = vmatpush.msra.mxu0 %v580
    %864 = vmatmul.f32.gmra.mxu0 %v390
    %v865 = vpop.f32.mrf.mxu0
    %v866 = vadd.f32 %v801, %v865
    %867 = vmatmul.f32.gmra.mxu0 %v394
    %v868 = vpop.f32.mrf.mxu0
    %v869 = vadd.f32 %v804, %v868
    %870 = vmatmul.f32.gmra.mxu0 %v398
    %v871 = vpop.f32.mrf.mxu0
    %v872 = vadd.f32 %v807, %v871
    %873 = vmatmul.f32.gmra.mxu0 %v402
    %v874 = vpop.f32.mrf.mxu0
    %v875 = vadd.f32 %v810, %v874
    %876 = vmatmul.f32.gmra.mxu0 %v406
    %v877 = vpop.f32.mrf.mxu0
    %v878 = vadd.f32 %v813, %v877
    %879 = vmatmul.f32.gmra.mxu0 %v410
    %v880 = vpop.f32.mrf.mxu0
    %v881 = vadd.f32 %v816, %v880
    %882 = vmatmul.f32.gmra.mxu0 %v414
    %v883 = vpop.f32.mrf.mxu0
    %v884 = vadd.f32 %v819, %v883
    %885 = vmatmul.f32.gmra.mxu0 %v418
    %v886 = vpop.f32.mrf.mxu0
    %v887 = vadd.f32 %v822, %v886
    %888 = vmatmul.f32.gmra.mxu0 %v422
    %v889 = vpop.f32.mrf.mxu0
    %v890 = vadd.f32 %v825, %v889
    %891 = vmatmul.f32.gmra.mxu0 %v426
    %v892 = vpop.f32.mrf.mxu0
    %v893 = vadd.f32 %v828, %v892
    %894 = vmatmul.f32.gmra.mxu0 %v430
    %v895 = vpop.f32.mrf.mxu0
    %v896 = vadd.f32 %v831, %v895
    %897 = vmatmul.f32.gmra.mxu0 %v434
    %v898 = vpop.f32.mrf.mxu0
    %v899 = vadd.f32 %v834, %v898
    %900 = vmatmul.f32.gmra.mxu0 %v438
    %v901 = vpop.f32.mrf.mxu0
    %v902 = vadd.f32 %v837, %v901
    %903 = vmatmul.f32.gmra.mxu0 %v442
    %v904 = vpop.f32.mrf.mxu0
    %v905 = vadd.f32 %v840, %v904
    %906 = vmatmul.f32.gmra.mxu0 %v446
    %v907 = vpop.f32.mrf.mxu0
    %v908 = vadd.f32 %v843, %v907
    %909 = vmatmul.f32.gmra.mxu0 %v450
    %v910 = vpop.f32.mrf.mxu0
    %v911 = vadd.f32 %v846, %v910
    %912 = vdwg.mxu0
    %913 = vmatpush.msra.mxu0 %v704
    %914 = vmatpush.msra.mxu0 %v700
    %915 = vmatpush.msra.mxu0 %v696
    %916 = vmatpush.msra.mxu0 %v692
    %917 = vmatpush.msra.mxu0 %v688
    %918 = vmatpush.msra.mxu0 %v684
    %919 = vmatpush.msra.mxu0 %v680
    %920 = vmatpush.msra.mxu0 %v676
    %921 = vmatpush.msra.mxu0 %v672
    %922 = vmatpush.msra.mxu0 %v668
    %923 = vmatpush.msra.mxu0 %v664
    %924 = vmatpush.msra.mxu0 %v660
    %925 = vmatpush.msra.mxu0 %v656
    %926 = vmatpush.msra.mxu0 %v652
    %927 = vmatpush.msra.mxu0 %v648
    %928 = vmatpush.msra.mxu0 %v644
    %929 = vmatmul.f32.gmra.mxu0 %v391
    %v930 = vpop.f32.mrf.mxu0
    %v931 = vadd.f32 %v866, %v930
    %932 = vmatmul.f32.gmra.mxu0 %v395
    %v933 = vpop.f32.mrf.mxu0
    %v934 = vadd.f32 %v869, %v933
    %935 = vmatmul.f32.gmra.mxu0 %v399
    %v936 = vpop.f32.mrf.mxu0
    %v937 = vadd.f32 %v872, %v936
    %938 = vmatmul.f32.gmra.mxu0 %v403
    %v939 = vpop.f32.mrf.mxu0
    %v940 = vadd.f32 %v875, %v939
    %941 = vmatmul.f32.gmra.mxu0 %v407
    %v942 = vpop.f32.mrf.mxu0
    %v943 = vadd.f32 %v878, %v942
    %944 = vmatmul.f32.gmra.mxu0 %v411
    %v945 = vpop.f32.mrf.mxu0
    %v946 = vadd.f32 %v881, %v945
    %947 = vmatmul.f32.gmra.mxu0 %v415
    %v948 = vpop.f32.mrf.mxu0
    %v949 = vadd.f32 %v884, %v948
    %950 = vmatmul.f32.gmra.mxu0 %v419
    %v951 = vpop.f32.mrf.mxu0
    %v952 = vadd.f32 %v887, %v951
    %953 = vmatmul.f32.gmra.mxu0 %v423
    %v954 = vpop.f32.mrf.mxu0
    %v955 = vadd.f32 %v890, %v954
    %956 = vmatmul.f32.gmra.mxu0 %v427
    %v957 = vpop.f32.mrf.mxu0
    %v958 = vadd.f32 %v893, %v957
    %959 = vmatmul.f32.gmra.mxu0 %v431
    %v960 = vpop.f32.mrf.mxu0
    %v961 = vadd.f32 %v896, %v960
    %962 = vmatmul.f32.gmra.mxu0 %v435
    %v963 = vpop.f32.mrf.mxu0
    %v964 = vadd.f32 %v899, %v963
    %965 = vmatmul.f32.gmra.mxu0 %v439
    %v966 = vpop.f32.mrf.mxu0
    %v967 = vadd.f32 %v902, %v966
    %968 = vmatmul.f32.gmra.mxu0 %v443
    %v969 = vpop.f32.mrf.mxu0
    %v970 = vadd.f32 %v905, %v969
    %971 = vmatmul.f32.gmra.mxu0 %v447
    %v972 = vpop.f32.mrf.mxu0
    %v973 = vadd.f32 %v908, %v972
    %974 = vmatmul.f32.gmra.mxu0 %v451
    %v975 = vpop.f32.mrf.mxu0
    %v976 = vadd.f32 %v911, %v975
    %977 = vdwg.mxu0
    %978 = vmatpush.msra.mxu0 %v513
    %979 = vmatpush.msra.mxu0 %v509
    %980 = vmatpush.msra.mxu0 %v505
    %981 = vmatpush.msra.mxu0 %v501
    %982 = vmatpush.msra.mxu0 %v497
    %983 = vmatpush.msra.mxu0 %v493
    %984 = vmatpush.msra.mxu0 %v489
    %985 = vmatpush.msra.mxu0 %v485
    %986 = vmatpush.msra.mxu0 %v481
    %987 = vmatpush.msra.mxu0 %v477
    %988 = vmatpush.msra.mxu0 %v473
    %989 = vmatpush.msra.mxu0 %v469
    %990 = vmatpush.msra.mxu0 %v465
    %991 = vmatpush.msra.mxu0 %v461
    %992 = vmatpush.msra.mxu0 %v457
    %993 = vmatpush.msra.mxu0 %v453
    %994 = vmatmul.f32.gmra.mxu0 %v388
    %v995 = vpop.f32.mrf.mxu0
    %v996 = vadd.f32 %v711, %v995
    %997 = vmatmul.f32.gmra.mxu0 %v392
    %v998 = vpop.f32.mrf.mxu0
    %v999 = vadd.f32 %v711, %v998
    %1000 = vmatmul.f32.gmra.mxu0 %v396
    %v1001 = vpop.f32.mrf.mxu0
    %v1002 = vadd.f32 %v711, %v1001
    %1003 = vmatmul.f32.gmra.mxu0 %v400
    %v1004 = vpop.f32.mrf.mxu0
    %v1005 = vadd.f32 %v711, %v1004
    %1006 = vmatmul.f32.gmra.mxu0 %v404
    %v1007 = vpop.f32.mrf.mxu0
    %v1008 = vadd.f32 %v711, %v1007
    %1009 = vmatmul.f32.gmra.mxu0 %v408
    %v1010 = vpop.f32.mrf.mxu0
    %v1011 = vadd.f32 %v711, %v1010
    %1012 = vmatmul.f32.gmra.mxu0 %v412
    %v1013 = vpop.f32.mrf.mxu0
    %v1014 = vadd.f32 %v711, %v1013
    %1015 = vmatmul.f32.gmra.mxu0 %v416
    %v1016 = vpop.f32.mrf.mxu0
    %v1017 = vadd.f32 %v711, %v1016
    %1018 = vmatmul.f32.gmra.mxu0 %v420
    %v1019 = vpop.f32.mrf.mxu0
    %v1020 = vadd.f32 %v711, %v1019
    %1021 = vmatmul.f32.gmra.mxu0 %v424
    %v1022 = vpop.f32.mrf.mxu0
    %v1023 = vadd.f32 %v711, %v1022
    %1024 = vmatmul.f32.gmra.mxu0 %v428
    %v1025 = vpop.f32.mrf.mxu0
    %v1026 = vadd.f32 %v711, %v1025
    %1027 = vmatmul.f32.gmra.mxu0 %v432
    %v1028 = vpop.f32.mrf.mxu0
    %v1029 = vadd.f32 %v711, %v1028
    %1030 = vmatmul.f32.gmra.mxu0 %v436
    %v1031 = vpop.f32.mrf.mxu0
    %v1032 = vadd.f32 %v711, %v1031
    %1033 = vmatmul.f32.gmra.mxu0 %v440
    %v1034 = vpop.f32.mrf.mxu0
    %v1035 = vadd.f32 %v711, %v1034
    %1036 = vmatmul.f32.gmra.mxu0 %v444
    %v1037 = vpop.f32.mrf.mxu0
    %v1038 = vadd.f32 %v711, %v1037
    %1039 = vmatmul.f32.gmra.mxu0 %v448
    %v1040 = vpop.f32.mrf.mxu0
    %v1041 = vadd.f32 %v711, %v1040
    %1042 = vdwg.mxu0
    %1043 = vmatpush.msra.mxu0 %v577
    %1044 = vmatpush.msra.mxu0 %v573
    %1045 = vmatpush.msra.mxu0 %v569
    %1046 = vmatpush.msra.mxu0 %v565
    %1047 = vmatpush.msra.mxu0 %v561
    %1048 = vmatpush.msra.mxu0 %v557
    %1049 = vmatpush.msra.mxu0 %v553
    %1050 = vmatpush.msra.mxu0 %v549
    %1051 = vmatpush.msra.mxu0 %v545
    %1052 = vmatpush.msra.mxu0 %v541
    %1053 = vmatpush.msra.mxu0 %v537
    %1054 = vmatpush.msra.mxu0 %v533
    %1055 = vmatpush.msra.mxu0 %v529
    %1056 = vmatpush.msra.mxu0 %v525
    %1057 = vmatpush.msra.mxu0 %v521
    %1058 = vmatpush.msra.mxu0 %v517
    %1059 = vmatmul.f32.gmra.mxu0 %v389
    %v1060 = vpop.f32.mrf.mxu0
    %v1061 = vadd.f32 %v996, %v1060
    %1062 = vmatmul.f32.gmra.mxu0 %v393
    %v1063 = vpop.f32.mrf.mxu0
    %v1064 = vadd.f32 %v999, %v1063
    %1065 = vmatmul.f32.gmra.mxu0 %v397
    %v1066 = vpop.f32.mrf.mxu0
    %v1067 = vadd.f32 %v1002, %v1066
    %1068 = vmatmul.f32.gmra.mxu0 %v401
    %v1069 = vpop.f32.mrf.mxu0
    %v1070 = vadd.f32 %v1005, %v1069
    %1071 = vmatmul.f32.gmra.mxu0 %v405
    %v1072 = vpop.f32.mrf.mxu0
    %v1073 = vadd.f32 %v1008, %v1072
    %1074 = vmatmul.f32.gmra.mxu0 %v409
    %v1075 = vpop.f32.mrf.mxu0
    %v1076 = vadd.f32 %v1011, %v1075
    %1077 = vmatmul.f32.gmra.mxu0 %v413
    %v1078 = vpop.f32.mrf.mxu0
    %v1079 = vadd.f32 %v1014, %v1078
    %1080 = vmatmul.f32.gmra.mxu0 %v417
    %v1081 = vpop.f32.mrf.mxu0
    %v1082 = vadd.f32 %v1017, %v1081
    %1083 = vmatmul.f32.gmra.mxu0 %v421
    %v1084 = vpop.f32.mrf.mxu0
    %v1085 = vadd.f32 %v1020, %v1084
    %1086 = vmatmul.f32.gmra.mxu0 %v425
    %v1087 = vpop.f32.mrf.mxu0
    %v1088 = vadd.f32 %v1023, %v1087
    %1089 = vmatmul.f32.gmra.mxu0 %v429
    %v1090 = vpop.f32.mrf.mxu0
    %v1091 = vadd.f32 %v1026, %v1090
    %1092 = vmatmul.f32.gmra.mxu0 %v433
    %v1093 = vpop.f32.mrf.mxu0
    %v1094 = vadd.f32 %v1029, %v1093
    %1095 = vmatmul.f32.gmra.mxu0 %v437
    %v1096 = vpop.f32.mrf.mxu0
    %v1097 = vadd.f32 %v1032, %v1096
    %1098 = vmatmul.f32.gmra.mxu0 %v441
    %v1099 = vpop.f32.mrf.mxu0
    %v1100 = vadd.f32 %v1035, %v1099
    %1101 = vmatmul.f32.gmra.mxu0 %v445
    %v1102 = vpop.f32.mrf.mxu0
    %v1103 = vadd.f32 %v1038, %v1102
    %1104 = vmatmul.f32.gmra.mxu0 %v449
    %v1105 = vpop.f32.mrf.mxu0
    %v1106 = vadd.f32 %v1041, %v1105
    %1107 = vdwg.mxu0
    %1108 = vmatpush.msra.mxu0 %v641
    %1109 = vmatpush.msra.mxu0 %v637
    %1110 = vmatpush.msra.mxu0 %v633
    %1111 = vmatpush.msra.mxu0 %v629
    %1112 = vmatpush.msra.mxu0 %v625
    %1113 = vmatpush.msra.mxu0 %v621
    %1114 = vmatpush.msra.mxu0 %v617
    %1115 = vmatpush.msra.mxu0 %v613
    %1116 = vmatpush.msra.mxu0 %v609
    %1117 = vmatpush.msra.mxu0 %v605
    %1118 = vmatpush.msra.mxu0 %v601
    %1119 = vmatpush.msra.mxu0 %v597
    %1120 = vmatpush.msra.mxu0 %v593
    %1121 = vmatpush.msra.mxu0 %v589
    %1122 = vmatpush.msra.mxu0 %v585
    %1123 = vmatpush.msra.mxu0 %v581
    %1124 = vmatmul.f32.gmra.mxu0 %v390
    %v1125 = vpop.f32.mrf.mxu0
    %v1126 = vadd.f32 %v1061, %v1125
    %1127 = vmatmul.f32.gmra.mxu0 %v394
    %v1128 = vpop.f32.mrf.mxu0
    %v1129 = vadd.f32 %v1064, %v1128
    %1130 = vmatmul.f32.gmra.mxu0 %v398
    %v1131 = vpop.f32.mrf.mxu0
    %v1132 = vadd.f32 %v1067, %v1131
    %1133 = vmatmul.f32.gmra.mxu0 %v402
    %v1134 = vpop.f32.mrf.mxu0
    %v1135 = vadd.f32 %v1070, %v1134
    %1136 = vmatmul.f32.gmra.mxu0 %v406
    %v1137 = vpop.f32.mrf.mxu0
    %v1138 = vadd.f32 %v1073, %v1137
    %1139 = vmatmul.f32.gmra.mxu0 %v410
    %v1140 = vpop.f32.mrf.mxu0
    %v1141 = vadd.f32 %v1076, %v1140
    %1142 = vmatmul.f32.gmra.mxu0 %v414
    %v1143 = vpop.f32.mrf.mxu0
    %v1144 = vadd.f32 %v1079, %v1143
    %1145 = vmatmul.f32.gmra.mxu0 %v418
    %v1146 = vpop.f32.mrf.mxu0
    %v1147 = vadd.f32 %v1082, %v1146
    %1148 = vmatmul.f32.gmra.mxu0 %v422
    %v1149 = vpop.f32.mrf.mxu0
    %v1150 = vadd.f32 %v1085, %v1149
    %1151 = vmatmul.f32.gmra.mxu0 %v426
    %v1152 = vpop.f32.mrf.mxu0
    %v1153 = vadd.f32 %v1088, %v1152
    %1154 = vmatmul.f32.gmra.mxu0 %v430
    %v1155 = vpop.f32.mrf.mxu0
    %v1156 = vadd.f32 %v1091, %v1155
    %1157 = vmatmul.f32.gmra.mxu0 %v434
    %v1158 = vpop.f32.mrf.mxu0
    %v1159 = vadd.f32 %v1094, %v1158
    %1160 = vmatmul.f32.gmra.mxu0 %v438
    %v1161 = vpop.f32.mrf.mxu0
    %v1162 = vadd.f32 %v1097, %v1161
    %1163 = vmatmul.f32.gmra.mxu0 %v442
    %v1164 = vpop.f32.mrf.mxu0
    %v1165 = vadd.f32 %v1100, %v1164
    %1166 = vmatmul.f32.gmra.mxu0 %v446
    %v1167 = vpop.f32.mrf.mxu0
    %v1168 = vadd.f32 %v1103, %v1167
    %1169 = vmatmul.f32.gmra.mxu0 %v450
    %v1170 = vpop.f32.mrf.mxu0
    %v1171 = vadd.f32 %v1106, %v1170
    %1172 = vdwg.mxu0
    %1173 = vmatpush.msra.mxu0 %v705
    %1174 = vmatpush.msra.mxu0 %v701
    %1175 = vmatpush.msra.mxu0 %v697
    %1176 = vmatpush.msra.mxu0 %v693
    %1177 = vmatpush.msra.mxu0 %v689
    %1178 = vmatpush.msra.mxu0 %v685
    %1179 = vmatpush.msra.mxu0 %v681
    %1180 = vmatpush.msra.mxu0 %v677
    %1181 = vmatpush.msra.mxu0 %v673
    %1182 = vmatpush.msra.mxu0 %v669
    %1183 = vmatpush.msra.mxu0 %v665
    %1184 = vmatpush.msra.mxu0 %v661
    %1185 = vmatpush.msra.mxu0 %v657
    %1186 = vmatpush.msra.mxu0 %v653
    %1187 = vmatpush.msra.mxu0 %v649
    %1188 = vmatpush.msra.mxu0 %v645
    %1189 = vmatmul.f32.gmra.mxu0 %v391
    %v1190 = vpop.f32.mrf.mxu0
    %v1191 = vadd.f32 %v1126, %v1190
    %1192 = vmatmul.f32.gmra.mxu0 %v395
    %v1193 = vpop.f32.mrf.mxu0
    %v1194 = vadd.f32 %v1129, %v1193
    %1195 = vmatmul.f32.gmra.mxu0 %v399
    %v1196 = vpop.f32.mrf.mxu0
    %v1197 = vadd.f32 %v1132, %v1196
    %1198 = vmatmul.f32.gmra.mxu0 %v403
    %v1199 = vpop.f32.mrf.mxu0
    %v1200 = vadd.f32 %v1135, %v1199
    %1201 = vmatmul.f32.gmra.mxu0 %v407
    %v1202 = vpop.f32.mrf.mxu0
    %v1203 = vadd.f32 %v1138, %v1202
    %1204 = vmatmul.f32.gmra.mxu0 %v411
    %v1205 = vpop.f32.mrf.mxu0
    %v1206 = vadd.f32 %v1141, %v1205
    %1207 = vmatmul.f32.gmra.mxu0 %v415
    %v1208 = vpop.f32.mrf.mxu0
    %v1209 = vadd.f32 %v1144, %v1208
    %1210 = vmatmul.f32.gmra.mxu0 %v419
    %v1211 = vpop.f32.mrf.mxu0
    %v1212 = vadd.f32 %v1147, %v1211
    %1213 = vmatmul.f32.gmra.mxu0 %v423
    %v1214 = vpop.f32.mrf.mxu0
    %v1215 = vadd.f32 %v1150, %v1214
    %1216 = vmatmul.f32.gmra.mxu0 %v427
    %v1217 = vpop.f32.mrf.mxu0
    %v1218 = vadd.f32 %v1153, %v1217
    %1219 = vmatmul.f32.gmra.mxu0 %v431
    %v1220 = vpop.f32.mrf.mxu0
    %v1221 = vadd.f32 %v1156, %v1220
    %1222 = vmatmul.f32.gmra.mxu0 %v435
    %v1223 = vpop.f32.mrf.mxu0
    %v1224 = vadd.f32 %v1159, %v1223
    %1225 = vmatmul.f32.gmra.mxu0 %v439
    %v1226 = vpop.f32.mrf.mxu0
    %v1227 = vadd.f32 %v1162, %v1226
    %1228 = vmatmul.f32.gmra.mxu0 %v443
    %v1229 = vpop.f32.mrf.mxu0
    %v1230 = vadd.f32 %v1165, %v1229
    %1231 = vmatmul.f32.gmra.mxu0 %v447
    %v1232 = vpop.f32.mrf.mxu0
    %v1233 = vadd.f32 %v1168, %v1232
    %1234 = vmatmul.f32.gmra.mxu0 %v451
    %v1235 = vpop.f32.mrf.mxu0
    %v1236 = vadd.f32 %v1171, %v1235
    %1237 = vdwg.mxu0
    %1238 = vmatpush.msra.mxu0 %v514
    %1239 = vmatpush.msra.mxu0 %v510
    %1240 = vmatpush.msra.mxu0 %v506
    %1241 = vmatpush.msra.mxu0 %v502
    %1242 = vmatpush.msra.mxu0 %v498
    %1243 = vmatpush.msra.mxu0 %v494
    %1244 = vmatpush.msra.mxu0 %v490
    %1245 = vmatpush.msra.mxu0 %v486
    %1246 = vmatpush.msra.mxu0 %v482
    %1247 = vmatpush.msra.mxu0 %v478
    %1248 = vmatpush.msra.mxu0 %v474
    %1249 = vmatpush.msra.mxu0 %v470
    %1250 = vmatpush.msra.mxu0 %v466
    %1251 = vmatpush.msra.mxu0 %v462
    %1252 = vmatpush.msra.mxu0 %v458
    %1253 = vmatpush.msra.mxu0 %v454
    %1254 = vmatmul.f32.gmra.mxu0 %v388
    %v1255 = vpop.f32.mrf.mxu0
    %v1256 = vadd.f32 %v712, %v1255
    %1257 = vmatmul.f32.gmra.mxu0 %v392
    %v1258 = vpop.f32.mrf.mxu0
    %v1259 = vadd.f32 %v712, %v1258
    %1260 = vmatmul.f32.gmra.mxu0 %v396
    %v1261 = vpop.f32.mrf.mxu0
    %v1262 = vadd.f32 %v712, %v1261
    %1263 = vmatmul.f32.gmra.mxu0 %v400
    %v1264 = vpop.f32.mrf.mxu0
    %v1265 = vadd.f32 %v712, %v1264
    %1266 = vmatmul.f32.gmra.mxu0 %v404
    %v1267 = vpop.f32.mrf.mxu0
    %v1268 = vadd.f32 %v712, %v1267
    %1269 = vmatmul.f32.gmra.mxu0 %v408
    %v1270 = vpop.f32.mrf.mxu0
    %v1271 = vadd.f32 %v712, %v1270
    %1272 = vmatmul.f32.gmra.mxu0 %v412
    %v1273 = vpop.f32.mrf.mxu0
    %v1274 = vadd.f32 %v712, %v1273
    %1275 = vmatmul.f32.gmra.mxu0 %v416
    %v1276 = vpop.f32.mrf.mxu0
    %v1277 = vadd.f32 %v712, %v1276
    %1278 = vmatmul.f32.gmra.mxu0 %v420
    %v1279 = vpop.f32.mrf.mxu0
    %v1280 = vadd.f32 %v712, %v1279
    %1281 = vmatmul.f32.gmra.mxu0 %v424
    %v1282 = vpop.f32.mrf.mxu0
    %v1283 = vadd.f32 %v712, %v1282
    %1284 = vmatmul.f32.gmra.mxu0 %v428
    %v1285 = vpop.f32.mrf.mxu0
    %v1286 = vadd.f32 %v712, %v1285
    %1287 = vmatmul.f32.gmra.mxu0 %v432
    %v1288 = vpop.f32.mrf.mxu0
    %v1289 = vadd.f32 %v712, %v1288
    %1290 = vmatmul.f32.gmra.mxu0 %v436
    %v1291 = vpop.f32.mrf.mxu0
    %v1292 = vadd.f32 %v712, %v1291
    %1293 = vmatmul.f32.gmra.mxu0 %v440
    %v1294 = vpop.f32.mrf.mxu0
    %v1295 = vadd.f32 %v712, %v1294
    %1296 = vmatmul.f32.gmra.mxu0 %v444
    %v1297 = vpop.f32.mrf.mxu0
    %v1298 = vadd.f32 %v712, %v1297
    %1299 = vmatmul.f32.gmra.mxu0 %v448
    %v1300 = vpop.f32.mrf.mxu0
    %v1301 = vadd.f32 %v712, %v1300
    %1302 = vdwg.mxu0
    %1303 = vmatpush.msra.mxu0 %v578
    %1304 = vmatpush.msra.mxu0 %v574
    %1305 = vmatpush.msra.mxu0 %v570
    %1306 = vmatpush.msra.mxu0 %v566
    %1307 = vmatpush.msra.mxu0 %v562
    %1308 = vmatpush.msra.mxu0 %v558
    %1309 = vmatpush.msra.mxu0 %v554
    %1310 = vmatpush.msra.mxu0 %v550
    %1311 = vmatpush.msra.mxu0 %v546
    %1312 = vmatpush.msra.mxu0 %v542
    %1313 = vmatpush.msra.mxu0 %v538
    %1314 = vmatpush.msra.mxu0 %v534
    %1315 = vmatpush.msra.mxu0 %v530
    %1316 = vmatpush.msra.mxu0 %v526
    %1317 = vmatpush.msra.mxu0 %v522
    %1318 = vmatpush.msra.mxu0 %v518
    %1319 = vmatmul.f32.gmra.mxu0 %v389
    %v1320 = vpop.f32.mrf.mxu0
    %v1321 = vadd.f32 %v1256, %v1320
    %1322 = vmatmul.f32.gmra.mxu0 %v393
    %v1323 = vpop.f32.mrf.mxu0
    %v1324 = vadd.f32 %v1259, %v1323
    %1325 = vmatmul.f32.gmra.mxu0 %v397
    %v1326 = vpop.f32.mrf.mxu0
    %v1327 = vadd.f32 %v1262, %v1326
    %1328 = vmatmul.f32.gmra.mxu0 %v401
    %v1329 = vpop.f32.mrf.mxu0
    %v1330 = vadd.f32 %v1265, %v1329
    %1331 = vmatmul.f32.gmra.mxu0 %v405
    %v1332 = vpop.f32.mrf.mxu0
    %v1333 = vadd.f32 %v1268, %v1332
    %1334 = vmatmul.f32.gmra.mxu0 %v409
    %v1335 = vpop.f32.mrf.mxu0
    %v1336 = vadd.f32 %v1271, %v1335
    %1337 = vmatmul.f32.gmra.mxu0 %v413
    %v1338 = vpop.f32.mrf.mxu0
    %v1339 = vadd.f32 %v1274, %v1338
    %1340 = vmatmul.f32.gmra.mxu0 %v417
    %v1341 = vpop.f32.mrf.mxu0
    %v1342 = vadd.f32 %v1277, %v1341
    %1343 = vmatmul.f32.gmra.mxu0 %v421
    %v1344 = vpop.f32.mrf.mxu0
    %v1345 = vadd.f32 %v1280, %v1344
    %1346 = vmatmul.f32.gmra.mxu0 %v425
    %v1347 = vpop.f32.mrf.mxu0
    %v1348 = vadd.f32 %v1283, %v1347
    %1349 = vmatmul.f32.gmra.mxu0 %v429
    %v1350 = vpop.f32.mrf.mxu0
    %v1351 = vadd.f32 %v1286, %v1350
    %1352 = vmatmul.f32.gmra.mxu0 %v433
    %v1353 = vpop.f32.mrf.mxu0
    %v1354 = vadd.f32 %v1289, %v1353
    %1355 = vmatmul.f32.gmra.mxu0 %v437
    %v1356 = vpop.f32.mrf.mxu0
    %v1357 = vadd.f32 %v1292, %v1356
    %1358 = vmatmul.f32.gmra.mxu0 %v441
    %v1359 = vpop.f32.mrf.mxu0
    %v1360 = vadd.f32 %v1295, %v1359
    %1361 = vmatmul.f32.gmra.mxu0 %v445
    %v1362 = vpop.f32.mrf.mxu0
    %v1363 = vadd.f32 %v1298, %v1362
    %1364 = vmatmul.f32.gmra.mxu0 %v449
    %v1365 = vpop.f32.mrf.mxu0
    %v1366 = vadd.f32 %v1301, %v1365
    %1367 = vdwg.mxu0
    %1368 = vmatpush.msra.mxu0 %v642
    %1369 = vmatpush.msra.mxu0 %v638
    %1370 = vmatpush.msra.mxu0 %v634
    %1371 = vmatpush.msra.mxu0 %v630
    %1372 = vmatpush.msra.mxu0 %v626
    %1373 = vmatpush.msra.mxu0 %v622
    %1374 = vmatpush.msra.mxu0 %v618
    %1375 = vmatpush.msra.mxu0 %v614
    %1376 = vmatpush.msra.mxu0 %v610
    %1377 = vmatpush.msra.mxu0 %v606
    %1378 = vmatpush.msra.mxu0 %v602
    %1379 = vmatpush.msra.mxu0 %v598
    %1380 = vmatpush.msra.mxu0 %v594
    %1381 = vmatpush.msra.mxu0 %v590
    %1382 = vmatpush.msra.mxu0 %v586
    %1383 = vmatpush.msra.mxu0 %v582
    %1384 = vmatmul.f32.gmra.mxu0 %v390
    %v1385 = vpop.f32.mrf.mxu0
    %v1386 = vadd.f32 %v1321, %v1385
    %1387 = vmatmul.f32.gmra.mxu0 %v394
    %v1388 = vpop.f32.mrf.mxu0
    %v1389 = vadd.f32 %v1324, %v1388
    %1390 = vmatmul.f32.gmra.mxu0 %v398
    %v1391 = vpop.f32.mrf.mxu0
    %v1392 = vadd.f32 %v1327, %v1391
    %1393 = vmatmul.f32.gmra.mxu0 %v402
    %v1394 = vpop.f32.mrf.mxu0
    %v1395 = vadd.f32 %v1330, %v1394
    %1396 = vmatmul.f32.gmra.mxu0 %v406
    %v1397 = vpop.f32.mrf.mxu0
    %v1398 = vadd.f32 %v1333, %v1397
    %1399 = vmatmul.f32.gmra.mxu0 %v410
    %v1400 = vpop.f32.mrf.mxu0
    %v1401 = vadd.f32 %v1336, %v1400
    %1402 = vmatmul.f32.gmra.mxu0 %v414
    %v1403 = vpop.f32.mrf.mxu0
    %v1404 = vadd.f32 %v1339, %v1403
    %1405 = vmatmul.f32.gmra.mxu0 %v418
    %v1406 = vpop.f32.mrf.mxu0
    %v1407 = vadd.f32 %v1342, %v1406
    %1408 = vmatmul.f32.gmra.mxu0 %v422
    %v1409 = vpop.f32.mrf.mxu0
    %v1410 = vadd.f32 %v1345, %v1409
    %1411 = vmatmul.f32.gmra.mxu0 %v426
    %v1412 = vpop.f32.mrf.mxu0
    %v1413 = vadd.f32 %v1348, %v1412
    %1414 = vmatmul.f32.gmra.mxu0 %v430
    %v1415 = vpop.f32.mrf.mxu0
    %v1416 = vadd.f32 %v1351, %v1415
    %1417 = vmatmul.f32.gmra.mxu0 %v434
    %v1418 = vpop.f32.mrf.mxu0
    %v1419 = vadd.f32 %v1354, %v1418
    %1420 = vmatmul.f32.gmra.mxu0 %v438
    %v1421 = vpop.f32.mrf.mxu0
    %v1422 = vadd.f32 %v1357, %v1421
    %1423 = vmatmul.f32.gmra.mxu0 %v442
    %v1424 = vpop.f32.mrf.mxu0
    %v1425 = vadd.f32 %v1360, %v1424
    %1426 = vmatmul.f32.gmra.mxu0 %v446
    %v1427 = vpop.f32.mrf.mxu0
    %v1428 = vadd.f32 %v1363, %v1427
    %1429 = vmatmul.f32.gmra.mxu0 %v450
    %v1430 = vpop.f32.mrf.mxu0
    %v1431 = vadd.f32 %v1366, %v1430
    %1432 = vdwg.mxu0
    %1433 = vmatpush.msra.mxu0 %v706
    %1434 = vmatpush.msra.mxu0 %v702
    %1435 = vmatpush.msra.mxu0 %v698
    %1436 = vmatpush.msra.mxu0 %v694
    %1437 = vmatpush.msra.mxu0 %v690
    %1438 = vmatpush.msra.mxu0 %v686
    %1439 = vmatpush.msra.mxu0 %v682
    %1440 = vmatpush.msra.mxu0 %v678
    %1441 = vmatpush.msra.mxu0 %v674
    %1442 = vmatpush.msra.mxu0 %v670
    %1443 = vmatpush.msra.mxu0 %v666
    %1444 = vmatpush.msra.mxu0 %v662
    %1445 = vmatpush.msra.mxu0 %v658
    %1446 = vmatpush.msra.mxu0 %v654
    %1447 = vmatpush.msra.mxu0 %v650
    %1448 = vmatpush.msra.mxu0 %v646
    %1449 = vmatmul.f32.gmra.mxu0 %v391
    %v1450 = vpop.f32.mrf.mxu0
    %v1451 = vadd.f32 %v1386, %v1450
    %1452 = vmatmul.f32.gmra.mxu0 %v395
    %v1453 = vpop.f32.mrf.mxu0
    %v1454 = vadd.f32 %v1389, %v1453
    %1455 = vmatmul.f32.gmra.mxu0 %v399
    %v1456 = vpop.f32.mrf.mxu0
    %v1457 = vadd.f32 %v1392, %v1456
    %1458 = vmatmul.f32.gmra.mxu0 %v403
    %v1459 = vpop.f32.mrf.mxu0
    %v1460 = vadd.f32 %v1395, %v1459
    %1461 = vmatmul.f32.gmra.mxu0 %v407
    %v1462 = vpop.f32.mrf.mxu0
    %v1463 = vadd.f32 %v1398, %v1462
    %1464 = vmatmul.f32.gmra.mxu0 %v411
    %v1465 = vpop.f32.mrf.mxu0
    %v1466 = vadd.f32 %v1401, %v1465
    %1467 = vmatmul.f32.gmra.mxu0 %v415
    %v1468 = vpop.f32.mrf.mxu0
    %v1469 = vadd.f32 %v1404, %v1468
    %1470 = vmatmul.f32.gmra.mxu0 %v419
    %v1471 = vpop.f32.mrf.mxu0
    %v1472 = vadd.f32 %v1407, %v1471
    %1473 = vmatmul.f32.gmra.mxu0 %v423
    %v1474 = vpop.f32.mrf.mxu0
    %v1475 = vadd.f32 %v1410, %v1474
    %1476 = vmatmul.f32.gmra.mxu0 %v427
    %v1477 = vpop.f32.mrf.mxu0
    %v1478 = vadd.f32 %v1413, %v1477
    %1479 = vmatmul.f32.gmra.mxu0 %v431
    %v1480 = vpop.f32.mrf.mxu0
    %v1481 = vadd.f32 %v1416, %v1480
    %1482 = vmatmul.f32.gmra.mxu0 %v435
    %v1483 = vpop.f32.mrf.mxu0
    %v1484 = vadd.f32 %v1419, %v1483
    %1485 = vmatmul.f32.gmra.mxu0 %v439
    %v1486 = vpop.f32.mrf.mxu0
    %v1487 = vadd.f32 %v1422, %v1486
    %1488 = vmatmul.f32.gmra.mxu0 %v443
    %v1489 = vpop.f32.mrf.mxu0
    %v1490 = vadd.f32 %v1425, %v1489
    %1491 = vmatmul.f32.gmra.mxu0 %v447
    %v1492 = vpop.f32.mrf.mxu0
    %v1493 = vadd.f32 %v1428, %v1492
    %1494 = vmatmul.f32.gmra.mxu0 %v451
    %v1495 = vpop.f32.mrf.mxu0
    %v1496 = vadd.f32 %v1431, %v1495
    %1497 = vdwg.mxu0
    %1498 = vmatpush.msra.mxu0 %v515
    %1499 = vmatpush.msra.mxu0 %v511
    %1500 = vmatpush.msra.mxu0 %v507
    %1501 = vmatpush.msra.mxu0 %v503
    %1502 = vmatpush.msra.mxu0 %v499
    %1503 = vmatpush.msra.mxu0 %v495
    %1504 = vmatpush.msra.mxu0 %v491
    %1505 = vmatpush.msra.mxu0 %v487
    %1506 = vmatpush.msra.mxu0 %v483
    %1507 = vmatpush.msra.mxu0 %v479
    %1508 = vmatpush.msra.mxu0 %v475
    %1509 = vmatpush.msra.mxu0 %v471
    %1510 = vmatpush.msra.mxu0 %v467
    %1511 = vmatpush.msra.mxu0 %v463
    %1512 = vmatpush.msra.mxu0 %v459
    %1513 = vmatpush.msra.mxu0 %v455
    %1514 = vmatmul.f32.gmra.mxu0 %v388
    %v1515 = vpop.f32.mrf.mxu0
    %v1516 = vadd.f32 %v713, %v1515
    %1517 = vmatmul.f32.gmra.mxu0 %v392
    %v1518 = vpop.f32.mrf.mxu0
    %v1519 = vadd.f32 %v713, %v1518
    %1520 = vmatmul.f32.gmra.mxu0 %v396
    %v1521 = vpop.f32.mrf.mxu0
    %v1522 = vadd.f32 %v713, %v1521
    %1523 = vmatmul.f32.gmra.mxu0 %v400
    %v1524 = vpop.f32.mrf.mxu0
    %v1525 = vadd.f32 %v713, %v1524
    %1526 = vmatmul.f32.gmra.mxu0 %v404
    %v1527 = vpop.f32.mrf.mxu0
    %v1528 = vadd.f32 %v713, %v1527
    %1529 = vmatmul.f32.gmra.mxu0 %v408
    %v1530 = vpop.f32.mrf.mxu0
    %v1531 = vadd.f32 %v713, %v1530
    %1532 = vmatmul.f32.gmra.mxu0 %v412
    %v1533 = vpop.f32.mrf.mxu0
    %v1534 = vadd.f32 %v713, %v1533
    %1535 = vmatmul.f32.gmra.mxu0 %v416
    %v1536 = vpop.f32.mrf.mxu0
    %v1537 = vadd.f32 %v713, %v1536
    %1538 = vmatmul.f32.gmra.mxu0 %v420
    %v1539 = vpop.f32.mrf.mxu0
    %v1540 = vadd.f32 %v713, %v1539
    %1541 = vmatmul.f32.gmra.mxu0 %v424
    %v1542 = vpop.f32.mrf.mxu0
    %v1543 = vadd.f32 %v713, %v1542
    %1544 = vmatmul.f32.gmra.mxu0 %v428
    %v1545 = vpop.f32.mrf.mxu0
    %v1546 = vadd.f32 %v713, %v1545
    %1547 = vmatmul.f32.gmra.mxu0 %v432
    %v1548 = vpop.f32.mrf.mxu0
    %v1549 = vadd.f32 %v713, %v1548
    %1550 = vmatmul.f32.gmra.mxu0 %v436
    %v1551 = vpop.f32.mrf.mxu0
    %v1552 = vadd.f32 %v713, %v1551
    %1553 = vmatmul.f32.gmra.mxu0 %v440
    %v1554 = vpop.f32.mrf.mxu0
    %v1555 = vadd.f32 %v713, %v1554
    %1556 = vmatmul.f32.gmra.mxu0 %v444
    %v1557 = vpop.f32.mrf.mxu0
    %v1558 = vadd.f32 %v713, %v1557
    %1559 = vmatmul.f32.gmra.mxu0 %v448
    %v1560 = vpop.f32.mrf.mxu0
    %v1561 = vadd.f32 %v713, %v1560
    %1562 = vdwg.mxu0
    %1563 = vmatpush.msra.mxu0 %v579
    %1564 = vmatpush.msra.mxu0 %v575
    %1565 = vmatpush.msra.mxu0 %v571
    %1566 = vmatpush.msra.mxu0 %v567
    %1567 = vmatpush.msra.mxu0 %v563
    %1568 = vmatpush.msra.mxu0 %v559
    %1569 = vmatpush.msra.mxu0 %v555
    %1570 = vmatpush.msra.mxu0 %v551
    %1571 = vmatpush.msra.mxu0 %v547
    %1572 = vmatpush.msra.mxu0 %v543
    %1573 = vmatpush.msra.mxu0 %v539
    %1574 = vmatpush.msra.mxu0 %v535
    %1575 = vmatpush.msra.mxu0 %v531
    %1576 = vmatpush.msra.mxu0 %v527
    %1577 = vmatpush.msra.mxu0 %v523
    %1578 = vmatpush.msra.mxu0 %v519
    %1579 = vmatmul.f32.gmra.mxu0 %v389
    %v1580 = vpop.f32.mrf.mxu0
    %v1581 = vadd.f32 %v1516, %v1580
    %1582 = vmatmul.f32.gmra.mxu0 %v393
    %v1583 = vpop.f32.mrf.mxu0
    %v1584 = vadd.f32 %v1519, %v1583
    %1585 = vmatmul.f32.gmra.mxu0 %v397
    %v1586 = vpop.f32.mrf.mxu0
    %v1587 = vadd.f32 %v1522, %v1586
    %1588 = vmatmul.f32.gmra.mxu0 %v401
    %v1589 = vpop.f32.mrf.mxu0
    %v1590 = vadd.f32 %v1525, %v1589
    %1591 = vmatmul.f32.gmra.mxu0 %v405
    %v1592 = vpop.f32.mrf.mxu0
    %v1593 = vadd.f32 %v1528, %v1592
    %1594 = vmatmul.f32.gmra.mxu0 %v409
    %v1595 = vpop.f32.mrf.mxu0
    %v1596 = vadd.f32 %v1531, %v1595
    %1597 = vmatmul.f32.gmra.mxu0 %v413
    %v1598 = vpop.f32.mrf.mxu0
    %v1599 = vadd.f32 %v1534, %v1598
    %1600 = vmatmul.f32.gmra.mxu0 %v417
    %v1601 = vpop.f32.mrf.mxu0
    %v1602 = vadd.f32 %v1537, %v1601
    %1603 = vmatmul.f32.gmra.mxu0 %v421
    %v1604 = vpop.f32.mrf.mxu0
    %v1605 = vadd.f32 %v1540, %v1604
    %1606 = vmatmul.f32.gmra.mxu0 %v425
    %v1607 = vpop.f32.mrf.mxu0
    %v1608 = vadd.f32 %v1543, %v1607
    %1609 = vmatmul.f32.gmra.mxu0 %v429
    %v1610 = vpop.f32.mrf.mxu0
    %v1611 = vadd.f32 %v1546, %v1610
    %1612 = vmatmul.f32.gmra.mxu0 %v433
    %v1613 = vpop.f32.mrf.mxu0
    %v1614 = vadd.f32 %v1549, %v1613
    %1615 = vmatmul.f32.gmra.mxu0 %v437
    %v1616 = vpop.f32.mrf.mxu0
    %v1617 = vadd.f32 %v1552, %v1616
    %1618 = vmatmul.f32.gmra.mxu0 %v441
    %v1619 = vpop.f32.mrf.mxu0
    %v1620 = vadd.f32 %v1555, %v1619
    %1621 = vmatmul.f32.gmra.mxu0 %v445
    %v1622 = vpop.f32.mrf.mxu0
    %v1623 = vadd.f32 %v1558, %v1622
    %1624 = vmatmul.f32.gmra.mxu0 %v449
    %v1625 = vpop.f32.mrf.mxu0
    %v1626 = vadd.f32 %v1561, %v1625
    %1627 = vdwg.mxu0
    %1628 = vmatpush.msra.mxu0 %v643
    %1629 = vmatpush.msra.mxu0 %v639
    %1630 = vmatpush.msra.mxu0 %v635
    %1631 = vmatpush.msra.mxu0 %v631
    %1632 = vmatpush.msra.mxu0 %v627
    %1633 = vmatpush.msra.mxu0 %v623
    %1634 = vmatpush.msra.mxu0 %v619
    %1635 = vmatpush.msra.mxu0 %v615
    %1636 = vmatpush.msra.mxu0 %v611
    %1637 = vmatpush.msra.mxu0 %v607
    %1638 = vmatpush.msra.mxu0 %v603
    %1639 = vmatpush.msra.mxu0 %v599
    %1640 = vmatpush.msra.mxu0 %v595
    %1641 = vmatpush.msra.mxu0 %v591
    %1642 = vmatpush.msra.mxu0 %v587
    %1643 = vmatpush.msra.mxu0 %v583
    %1644 = vmatmul.f32.gmra.mxu0 %v390
    %v1645 = vpop.f32.mrf.mxu0
    %v1646 = vadd.f32 %v1581, %v1645
    %1647 = vmatmul.f32.gmra.mxu0 %v394
    %v1648 = vpop.f32.mrf.mxu0
    %v1649 = vadd.f32 %v1584, %v1648
    %1650 = vmatmul.f32.gmra.mxu0 %v398
    %v1651 = vpop.f32.mrf.mxu0
    %v1652 = vadd.f32 %v1587, %v1651
    %1653 = vmatmul.f32.gmra.mxu0 %v402
    %v1654 = vpop.f32.mrf.mxu0
    %v1655 = vadd.f32 %v1590, %v1654
    %1656 = vmatmul.f32.gmra.mxu0 %v406
    %v1657 = vpop.f32.mrf.mxu0
    %v1658 = vadd.f32 %v1593, %v1657
    %1659 = vmatmul.f32.gmra.mxu0 %v410
    %v1660 = vpop.f32.mrf.mxu0
    %v1661 = vadd.f32 %v1596, %v1660
    %1662 = vmatmul.f32.gmra.mxu0 %v414
    %v1663 = vpop.f32.mrf.mxu0
    %v1664 = vadd.f32 %v1599, %v1663
    %1665 = vmatmul.f32.gmra.mxu0 %v418
    %v1666 = vpop.f32.mrf.mxu0
    %v1667 = vadd.f32 %v1602, %v1666
    %1668 = vmatmul.f32.gmra.mxu0 %v422
    %v1669 = vpop.f32.mrf.mxu0
    %v1670 = vadd.f32 %v1605, %v1669
    %1671 = vmatmul.f32.gmra.mxu0 %v426
    %v1672 = vpop.f32.mrf.mxu0
    %v1673 = vadd.f32 %v1608, %v1672
    %1674 = vmatmul.f32.gmra.mxu0 %v430
    %v1675 = vpop.f32.mrf.mxu0
    %v1676 = vadd.f32 %v1611, %v1675
    %1677 = vmatmul.f32.gmra.mxu0 %v434
    %v1678 = vpop.f32.mrf.mxu0
    %v1679 = vadd.f32 %v1614, %v1678
    %1680 = vmatmul.f32.gmra.mxu0 %v438
    %v1681 = vpop.f32.mrf.mxu0
    %v1682 = vadd.f32 %v1617, %v1681
    %1683 = vmatmul.f32.gmra.mxu0 %v442
    %v1684 = vpop.f32.mrf.mxu0
    %v1685 = vadd.f32 %v1620, %v1684
    %1686 = vmatmul.f32.gmra.mxu0 %v446
    %v1687 = vpop.f32.mrf.mxu0
    %v1688 = vadd.f32 %v1623, %v1687
    %1689 = vmatmul.f32.gmra.mxu0 %v450
    %v1690 = vpop.f32.mrf.mxu0
    %v1691 = vadd.f32 %v1626, %v1690
    %1692 = vdwg.mxu0
    %1693 = vmatpush.msra.mxu0 %v707
    %1694 = vmatpush.msra.mxu0 %v703
    %1695 = vmatpush.msra.mxu0 %v699
    %1696 = vmatpush.msra.mxu0 %v695
    %1697 = vmatpush.msra.mxu0 %v691
    %1698 = vmatpush.msra.mxu0 %v687
    %1699 = vmatpush.msra.mxu0 %v683
    %1700 = vmatpush.msra.mxu0 %v679
    %1701 = vmatpush.msra.mxu0 %v675
    %1702 = vmatpush.msra.mxu0 %v671
    %1703 = vmatpush.msra.mxu0 %v667
    %1704 = vmatpush.msra.mxu0 %v663
    %1705 = vmatpush.msra.mxu0 %v659
    %1706 = vmatpush.msra.mxu0 %v655
    %1707 = vmatpush.msra.mxu0 %v651
    %1708 = vmatpush.msra.mxu0 %v647
    %1709 = vmatmul.f32.gmra.mxu0 %v391
    %v1710 = vpop.f32.mrf.mxu0
    %v1711 = vadd.f32 %v1646, %v1710
    %1712 = vmatmul.f32.gmra.mxu0 %v395
    %v1713 = vpop.f32.mrf.mxu0
    %v1714 = vadd.f32 %v1649, %v1713
    %1715 = vmatmul.f32.gmra.mxu0 %v399
    %v1716 = vpop.f32.mrf.mxu0
    %v1717 = vadd.f32 %v1652, %v1716
    %1718 = vmatmul.f32.gmra.mxu0 %v403
    %v1719 = vpop.f32.mrf.mxu0
    %v1720 = vadd.f32 %v1655, %v1719
    %1721 = vmatmul.f32.gmra.mxu0 %v407
    %v1722 = vpop.f32.mrf.mxu0
    %v1723 = vadd.f32 %v1658, %v1722
    %1724 = vmatmul.f32.gmra.mxu0 %v411
    %v1725 = vpop.f32.mrf.mxu0
    %v1726 = vadd.f32 %v1661, %v1725
    %1727 = vmatmul.f32.gmra.mxu0 %v415
    %v1728 = vpop.f32.mrf.mxu0
    %v1729 = vadd.f32 %v1664, %v1728
    %1730 = vmatmul.f32.gmra.mxu0 %v419
    %v1731 = vpop.f32.mrf.mxu0
    %v1732 = vadd.f32 %v1667, %v1731
    %1733 = vmatmul.f32.gmra.mxu0 %v423
    %v1734 = vpop.f32.mrf.mxu0
    %v1735 = vadd.f32 %v1670, %v1734
    %1736 = vmatmul.f32.gmra.mxu0 %v427
    %v1737 = vpop.f32.mrf.mxu0
    %v1738 = vadd.f32 %v1673, %v1737
    %1739 = vmatmul.f32.gmra.mxu0 %v431
    %v1740 = vpop.f32.mrf.mxu0
    %v1741 = vadd.f32 %v1676, %v1740
    %1742 = vmatmul.f32.gmra.mxu0 %v435
    %v1743 = vpop.f32.mrf.mxu0
    %v1744 = vadd.f32 %v1679, %v1743
    %1745 = vmatmul.f32.gmra.mxu0 %v439
    %v1746 = vpop.f32.mrf.mxu0
    %v1747 = vadd.f32 %v1682, %v1746
    %1748 = vmatmul.f32.gmra.mxu0 %v443
    %v1749 = vpop.f32.mrf.mxu0
    %v1750 = vadd.f32 %v1685, %v1749
    %1751 = vmatmul.f32.gmra.mxu0 %v447
    %v1752 = vpop.f32.mrf.mxu0
    %v1753 = vadd.f32 %v1688, %v1752
    %1754 = vmatmul.f32.gmra.mxu0 %v451
    %v1755 = vpop.f32.mrf.mxu0
    %v1756 = vadd.f32 %v1691, %v1755
    %1757 = vdwg.mxu0
    %v1758 = vmax.f32 %v931, 0.0
    %v1759 = vmax.f32 %v1191, 0.0
    %v1760 = vmax.f32 %v1451, 0.0
    %v1761 = vmax.f32 %v1711, 0.0
    %v1762 = vmax.f32 %v934, 0.0
    %v1763 = vmax.f32 %v1194, 0.0
    %v1764 = vmax.f32 %v1454, 0.0
    %v1765 = vmax.f32 %v1714, 0.0
    %v1766 = vmax.f32 %v937, 0.0
    %v1767 = vmax.f32 %v1197, 0.0
    %v1768 = vmax.f32 %v1457, 0.0
    %v1769 = vmax.f32 %v1717, 0.0
    %v1770 = vmax.f32 %v940, 0.0
    %v1771 = vmax.f32 %v1200, 0.0
    %v1772 = vmax.f32 %v1460, 0.0
    %v1773 = vmax.f32 %v1720, 0.0
    %v1774 = vmax.f32 %v943, 0.0
    %v1775 = vmax.f32 %v1203, 0.0
    %v1776 = vmax.f32 %v1463, 0.0
    %v1777 = vmax.f32 %v1723, 0.0
    %v1778 = vmax.f32 %v946, 0.0
    %v1779 = vmax.f32 %v1206, 0.0
    %v1780 = vmax.f32 %v1466, 0.0
    %v1781 = vmax.f32 %v1726, 0.0
    %v1782 = vmax.f32 %v949, 0.0
    %v1783 = vmax.f32 %v1209, 0.0
    %v1784 = vmax.f32 %v1469, 0.0
    %v1785 = vmax.f32 %v1729, 0.0
    %v1786 = vmax.f32 %v952, 0.0
    %v1787 = vmax.f32 %v1212, 0.0
    %v1788 = vmax.f32 %v1472, 0.0
    %v1789 = vmax.f32 %v1732, 0.0
    %v1790 = vmax.f32 %v955, 0.0
    %v1791 = vmax.f32 %v1215, 0.0
    %v1792 = vmax.f32 %v1475, 0.0
    %v1793 = vmax.f32 %v1735, 0.0
    %v1794 = vmax.f32 %v958, 0.0
    %v1795 = vmax.f32 %v1218, 0.0
    %v1796 = vmax.f32 %v1478, 0.0
    %v1797 = vmax.f32 %v1738, 0.0
    %v1798 = vmax.f32 %v961, 0.0
    %v1799 = vmax.f32 %v1221, 0.0
    %v1800 = vmax.f32 %v1481, 0.0
    %v1801 = vmax.f32 %v1741, 0.0
    %v1802 = vmax.f32 %v964, 0.0
    %v1803 = vmax.f32 %v1224, 0.0
    %v1804 = vmax.f32 %v1484, 0.0
    %v1805 = vmax.f32 %v1744, 0.0
    %v1806 = vmax.f32 %v967, 0.0
    %v1807 = vmax.f32 %v1227, 0.0
    %v1808 = vmax.f32 %v1487, 0.0
    %v1809 = vmax.f32 %v1747, 0.0
    %v1810 = vmax.f32 %v970, 0.0
    %v1811 = vmax.f32 %v1230, 0.0
    %v1812 = vmax.f32 %v1490, 0.0
    %v1813 = vmax.f32 %v1750, 0.0
    %v1814 = vmax.f32 %v973, 0.0
    %v1815 = vmax.f32 %v1233, 0.0
    %v1816 = vmax.f32 %v1493, 0.0
    %v1817 = vmax.f32 %v1753, 0.0
    %v1818 = vmax.f32 %v976, 0.0
    %v1819 = vmax.f32 %v1236, 0.0
    %v1820 = vmax.f32 %v1496, 0.0
    %v1821 = vmax.f32 %v1756, 0.0
    %v1822 = vld [vmem:[%s5] sm:$0xf]
    %v1824 = vperm.slane %v1822, 0
    %v1825 = vperm.slane %v1822, 1
    %v1826 = vperm.slane %v1822, 2
    %v1827 = vperm.slane %v1822, 3
    %v1832 = vmul.f32 %v1758, %v1824
    %v1833 = vmul.f32 %v1759, %v1825
    %v1834 = vmul.f32 %v1760, %v1826
    %v1835 = vmul.f32 %v1761, %v1827
    %v1836 = vmul.f32 %v1762, %v1824
    %v1837 = vmul.f32 %v1763, %v1825
    %v1838 = vmul.f32 %v1764, %v1826
    %v1839 = vmul.f32 %v1765, %v1827
    %v1840 = vmul.f32 %v1766, %v1824
    %v1841 = vmul.f32 %v1767, %v1825
    %v1842 = vmul.f32 %v1768, %v1826
    %v1843 = vmul.f32 %v1769, %v1827
    %v1844 = vmul.f32 %v1770, %v1824
    %v1845 = vmul.f32 %v1771, %v1825
    %v1846 = vmul.f32 %v1772, %v1826
    %v1847 = vmul.f32 %v1773, %v1827
    %v1848 = vmul.f32 %v1774, %v1824
    %v1849 = vmul.f32 %v1775, %v1825
    %v1850 = vmul.f32 %v1776, %v1826
    %v1851 = vmul.f32 %v1777, %v1827
    %v1852 = vmul.f32 %v1778, %v1824
    %v1853 = vmul.f32 %v1779, %v1825
    %v1854 = vmul.f32 %v1780, %v1826
    %v1855 = vmul.f32 %v1781, %v1827
    %v1856 = vmul.f32 %v1782, %v1824
    %v1857 = vmul.f32 %v1783, %v1825
    %v1858 = vmul.f32 %v1784, %v1826
    %v1859 = vmul.f32 %v1785, %v1827
    %v1860 = vmul.f32 %v1786, %v1824
    %v1861 = vmul.f32 %v1787, %v1825
    %v1862 = vmul.f32 %v1788, %v1826
    %v1863 = vmul.f32 %v1789, %v1827
    %v1864 = vmul.f32 %v1790, %v1824
    %v1865 = vmul.f32 %v1791, %v1825
    %v1866 = vmul.f32 %v1792, %v1826
    %v1867 = vmul.f32 %v1793, %v1827
    %v1868 = vmul.f32 %v1794, %v1824
    %v1869 = vmul.f32 %v1795, %v1825
    %v1870 = vmul.f32 %v1796, %v1826
    %v1871 = vmul.f32 %v1797, %v1827
    %v1872 = vmul.f32 %v1798, %v1824
    %v1873 = vmul.f32 %v1799, %v1825
    %v1874 = vmul.f32 %v1800, %v1826
    %v1875 = vmul.f32 %v1801, %v1827
    %v1876 = vmul.f32 %v1802, %v1824
    %v1877 = vmul.f32 %v1803, %v1825
    %v1878 = vmul.f32 %v1804, %v1826
    %v1879 = vmul.f32 %v1805, %v1827
    %v1880 = vmul.f32 %v1806, %v1824
    %v1881 = vmul.f32 %v1807, %v1825
    %v1882 = vmul.f32 %v1808, %v1826
    %v1883 = vmul.f32 %v1809, %v1827
    %v1884 = vmul.f32 %v1810, %v1824
    %v1885 = vmul.f32 %v1811, %v1825
    %v1886 = vmul.f32 %v1812, %v1826
    %v1887 = vmul.f32 %v1813, %v1827
    %v1888 = vmul.f32 %v1814, %v1824
    %v1889 = vmul.f32 %v1815, %v1825
    %v1890 = vmul.f32 %v1816, %v1826
    %v1891 = vmul.f32 %v1817, %v1827
    %v1892 = vmul.f32 %v1818, %v1824
    %v1893 = vmul.f32 %v1819, %v1825
    %v1894 = vmul.f32 %v1820, %v1826
    %v1895 = vmul.f32 %v1821, %v1827
    %v1896 = vadd.f32 %v1832, %v1833
    %v1897 = vadd.f32 %v1896, %v1834
    %v1898 = vadd.f32 %v1897, %v1835
    %1899 = vadd.xlane.f32.xlu0 %v1898
    %v1900 = vpop.xlane.xlu0 %1899
    %v1901 = vadd.f32 %v1836, %v1837
    %v1902 = vadd.f32 %v1901, %v1838
    %v1903 = vadd.f32 %v1902, %v1839
    %1904 = vadd.xlane.f32.xlu0 %v1903
    %v1905 = vpop.xlane.xlu0 %1904
    %v1906 = vadd.f32 %v1840, %v1841
    %v1907 = vadd.f32 %v1906, %v1842
    %v1908 = vadd.f32 %v1907, %v1843
    %1909 = vadd.xlane.f32.xlu0 %v1908
    %v1910 = vpop.xlane.xlu0 %1909
    %v1911 = vadd.f32 %v1844, %v1845
    %v1912 = vadd.f32 %v1911, %v1846
    %v1913 = vadd.f32 %v1912, %v1847
    %1914 = vadd.xlane.f32.xlu0 %v1913
    %v1915 = vpop.xlane.xlu0 %1914
    %v1916 = vadd.f32 %v1848, %v1849
    %v1917 = vadd.f32 %v1916, %v1850
    %v1918 = vadd.f32 %v1917, %v1851
    %1919 = vadd.xlane.f32.xlu0 %v1918
    %v1920 = vpop.xlane.xlu0 %1919
    %v1921 = vadd.f32 %v1852, %v1853
    %v1922 = vadd.f32 %v1921, %v1854
    %v1923 = vadd.f32 %v1922, %v1855
    %1924 = vadd.xlane.f32.xlu0 %v1923
    %v1925 = vpop.xlane.xlu0 %1924
    %v1926 = vadd.f32 %v1856, %v1857
    %v1927 = vadd.f32 %v1926, %v1858
    %v1928 = vadd.f32 %v1927, %v1859
    %1929 = vadd.xlane.f32.xlu0 %v1928
    %v1930 = vpop.xlane.xlu0 %1929
    %v1931 = vadd.f32 %v1860, %v1861
    %v1932 = vadd.f32 %v1931, %v1862
    %v1933 = vadd.f32 %v1932, %v1863
    %1934 = vadd.xlane.f32.xlu0 %v1933
    %v1935 = vpop.xlane.xlu0 %1934
    %v1936 = vadd.f32 %v1864, %v1865
    %v1937 = vadd.f32 %v1936, %v1866
    %v1938 = vadd.f32 %v1937, %v1867
    %1939 = vadd.xlane.f32.xlu0 %v1938
    %v1940 = vpop.xlane.xlu0 %1939
    %v1941 = vadd.f32 %v1868, %v1869
    %v1942 = vadd.f32 %v1941, %v1870
    %v1943 = vadd.f32 %v1942, %v1871
    %1944 = vadd.xlane.f32.xlu0 %v1943
    %v1945 = vpop.xlane.xlu0 %1944
    %v1946 = vadd.f32 %v1872, %v1873
    %v1947 = vadd.f32 %v1946, %v1874
    %v1948 = vadd.f32 %v1947, %v1875
    %1949 = vadd.xlane.f32.xlu0 %v1948
    %v1950 = vpop.xlane.xlu0 %1949
    %v1951 = vadd.f32 %v1876, %v1877
    %v1952 = vadd.f32 %v1951, %v1878
    %v1953 = vadd.f32 %v1952, %v1879
    %1954 = vadd.xlane.f32.xlu0 %v1953
    %v1955 = vpop.xlane.xlu0 %1954
    %v1956 = vadd.f32 %v1880, %v1881
    %v1957 = vadd.f32 %v1956, %v1882
    %v1958 = vadd.f32 %v1957, %v1883
    %1959 = vadd.xlane.f32.xlu0 %v1958
    %v1960 = vpop.xlane.xlu0 %1959
    %v1961 = vadd.f32 %v1884, %v1885
    %v1962 = vadd.f32 %v1961, %v1886
    %v1963 = vadd.f32 %v1962, %v1887
    %1964 = vadd.xlane.f32.xlu0 %v1963
    %v1965 = vpop.xlane.xlu0 %1964
    %v1966 = vadd.f32 %v1888, %v1889
    %v1967 = vadd.f32 %v1966, %v1890
    %v1968 = vadd.f32 %v1967, %v1891
    %1969 = vadd.xlane.f32.xlu0 %v1968
    %v1970 = vpop.xlane.xlu0 %1969
    %v1971 = vadd.f32 %v1892, %v1893
    %v1972 = vadd.f32 %v1971, %v1894
    %v1973 = vadd.f32 %v1972, %v1895
    %1974 = vadd.xlane.f32.xlu0 %v1973
    %v1975 = vpop.xlane.xlu0 %1974
    %v1976 = vld [vmem:[#allocation2] sm:$0x1]
    %1978 = vset.pattern.permute.xlu0 0
    %1979 = vperm.xlu0 %1978, %v1976
    %v1980 = vpop.permute.xlu0 %1979
    %v1982 = vperm.slane %v1980, 0
    %v1983 = vadd.f32 %v1900, %v1982
    %v1984 = vadd.f32 %v1905, %v1982
    %v1985 = vadd.f32 %v1910, %v1982
    %v1986 = vadd.f32 %v1915, %v1982
    %v1987 = vadd.f32 %v1920, %v1982
    %v1988 = vadd.f32 %v1925, %v1982
    %v1989 = vadd.f32 %v1930, %v1982
    %v1990 = vadd.f32 %v1935, %v1982
    %v1991 = vadd.f32 %v1940, %v1982
    %v1992 = vadd.f32 %v1945, %v1982
    %v1993 = vadd.f32 %v1950, %v1982
    %v1994 = vadd.f32 %v1955, %v1982
    %v1995 = vadd.f32 %v1960, %v1982
    %v1996 = vadd.f32 %v1965, %v1982
    %v1997 = vadd.f32 %v1970, %v1982
    %v1998 = vadd.f32 %v1975, %v1982
    %v2015 = vlaneseq
    %v2016 = vand.u32 %v2015, 127
    %v2017 = vperm.slane %v1983, %v2016
    %v2018 = vadd.s32 %v2016, 4294967288
    %v2019 = vperm.slane %v1984, %v2018
    %vm2020 = vcmask 130112
    %v2021 = vsel %vm2020, %v2019, %v2017
    %v2022 = vadd.s32 %v2016, 4294967280
    %v2023 = vperm.slane %v1985, %v2022
    %vm2024 = vcmask 195712
    %v2025 = vsel %vm2024, %v2023, %v2021
    %v2026 = vadd.s32 %v2016, 4294967272
    %v2027 = vperm.slane %v1986, %v2026
    %vm2028 = vcmask 261312
    %v2029 = vsel %vm2028, %v2027, %v2025
    %v2030 = vadd.s32 %v2016, 4294967264
    %v2031 = vperm.slane %v1987, %v2030
    %vm2032 = vcmask 326912
    %v2033 = vsel %vm2032, %v2031, %v2029
    %v2034 = vadd.s32 %v2016, 4294967256
    %v2035 = vperm.slane %v1988, %v2034
    %vm2036 = vcmask 392512
    %v2037 = vsel %vm2036, %v2035, %v2033
    %v2038 = vadd.s32 %v2016, 4294967248
    %v2039 = vperm.slane %v1989, %v2038
    %vm2040 = vcmask 458112
    %v2041 = vsel %vm2040, %v2039, %v2037
    %v2042 = vadd.s32 %v2016, 4294967240
    %v2043 = vperm.slane %v1990, %v2042
    %vm2044 = vcmask 523712
    %v2045 = vsel %vm2044, %v2043, %v2041
    %v2046 = vadd.s32 %v2016, 4294967232
    %v2047 = vperm.slane %v1991, %v2046
    %vm2048 = vcmask 589312
    %v2049 = vsel %vm2048, %v2047, %v2045
    %v2050 = vadd.s32 %v2016, 4294967224
    %v2051 = vperm.slane %v1992, %v2050
    %vm2052 = vcmask 654912
    %v2053 = vsel %vm2052, %v2051, %v2049
    %v2054 = vadd.s32 %v2016, 4294967216
    %v2055 = vperm.slane %v1993, %v2054
    %vm2056 = vcmask 720512
    %v2057 = vsel %vm2056, %v2055, %v2053
    %v2058 = vadd.s32 %v2016, 4294967208
    %v2059 = vperm.slane %v1994, %v2058
    %vm2060 = vcmask 786112
    %v2061 = vsel %vm2060, %v2059, %v2057
    %v2062 = vadd.s32 %v2016, 4294967200
    %v2063 = vperm.slane %v1995, %v2062
    %vm2064 = vcmask 851712
    %v2065 = vsel %vm2064, %v2063, %v2061
    %v2066 = vadd.s32 %v2016, 4294967192
    %v2067 = vperm.slane %v1996, %v2066
    %vm2068 = vcmask 917312
    %v2069 = vsel %vm2068, %v2067, %v2065
    %v2070 = vadd.s32 %v2016, 4294967184
    %v2071 = vperm.slane %v1997, %v2070
    %vm2072 = vcmask 982912
    %v2073 = vsel %vm2072, %v2071, %v2069
    %v2074 = vadd.s32 %v2016, 4294967176
    %v2075 = vperm.slane %v1998, %v2074
    %vm2076 = vcmask 1048512
    %v2077 = vsel %vm2076, %v2075, %v2073
    %2079 = vst [vmem:[#allocation6] sm:$0x1] %v2077
    // Predicated region
    $region34: #{tpu_custom_call.1} parent=1 // pred_check
      _
    $region35: #{tpu_custom_call.1} parent=1 // pred_check_branch
      %2081 = sbr.rel (0) target = $region37
    $region36: #{tpu_custom_call.1} parent=1 // pred_region
      %2083 = vsyncadd [#allocation5], 0
      %s2085 = sshll.u32 [#allocation6], 4
      %s2086 = int_to_ptr.vmem [resolvable:$true] %s2085
      %s2087 = sshll.u32 %s7, 4
      %s2088 = int_to_ptr.hbm [resolvable:$true] %s2087
      %2090 = dma.vmem_to_hbm [thread:$0]  %s2086, 16, %s2088, [#allocation5]
    $region37: #{tpu_custom_call.1} parent=1 // pred_fallthru
      _
    // Predicated region
    $region38: #{tpu_custom_call.1} parent=1 // pred_check
      _
    $region39: #{tpu_custom_call.1} parent=1 // pred_check_branch
      %2092 = sbr.rel (0) target = $region41
    $region40: #{tpu_custom_call.1} parent=1 // pred_region
      %2094 = dma.done [#allocation5], 16
    $region41: #{tpu_custom_call.1} parent=1 // pred_fallthru
      _
    %2095 = vsyncpa [#allocation4], 1
    %2096 = vsyncpa [#allocation5], 1

</llo_original>
